<compile_context>
chip_gen: v7x
topology: tpu7x:2x2x1
jax: 0.10.0
libtpu: 0.0.40
codegen_flags: <defaults>
</compile_context>

<pallas_src>
import numpy as np
import jax
import jax.numpy as jnp
from jax import lax
from jax.experimental import pallas as pl
from jax.experimental.pallas import tpu as pltpu


def spectral_conv1d_kernel(x_ref, f_ref, wr_ref, wi_ref, g_ref, o_ref):
    bb, c_in, n = x_ref.shape
    modes, _, c_out = wr_ref.shape

    # Fold the batch block into the matmul M dimension.
    x2d = x_ref[...].reshape(bb * c_in, n)                     # (bb*Cin, N)
    f = f_ref[...]                                             # (N, 2M) = [cos | -sin]
    g = g_ref[...]                                             # (2M, N)
    wr = wr_ref[...]                                           # (M, Cin, Cout)
    wi = wi_ref[...]

    # Forward truncated rfft: one fused MXU matmul -> [Xr | Xi].
    xf = jnp.dot(x2d, f, preferred_element_type=jnp.float32)   # (bb*Cin, 2M)

    # Re-layout so `modes` is the dot_general batch dim for the mixing.
    xf_t = xf.T.reshape(2 * modes, bb, c_in)                   # (2M, bb, Cin)
    xr = xf_t[:modes]                                          # (M, bb, Cin)
    xi = xf_t[modes:]

    # Complex channel mixing on the MXU, batched over modes:
    #   Yr = Xr.Wr - Xi.Wi ;  Yi = Xr.Wi + Xi.Wr   (contract C_in per mode)
    dn = (((2,), (1,)), ((0,), (0,)))
    rr = lax.dot_general(xr, wr, dn, preferred_element_type=jnp.float32)
    ii = lax.dot_general(xi, wi, dn, preferred_element_type=jnp.float32)
    ri = lax.dot_general(xr, wi, dn, preferred_element_type=jnp.float32)
    ir = lax.dot_general(xi, wr, dn, preferred_element_type=jnp.float32)
    yr = rr - ii                                               # (M, bb, Cout)
    yi = ri + ir

    # Fused irfft: one matmul contracting the stacked [Yr ; Yi] frequency dim.
    y = jnp.concatenate([yr.reshape(modes, bb * c_out),
                         yi.reshape(modes, bb * c_out)], axis=0)   # (2M, bb*Cout)
    out = jnp.dot(y.T, g, preferred_element_type=jnp.float32)      # (bb*Cout, N)
    o_ref[...] = out.reshape(bb, c_out, n).astype(o_ref.dtype)


def _choose_block_b(batch, channels):
    # Fold enough batch elements per grid step to feed the MXU (~256 rows in
    # the folded (block_b*C, N) matmul), but keep >= 2 grid steps when the
    # batch allows it so both v7x TensorCores get work (no-op on v5e/v6e).
    want = max(1, 256 // max(channels, 1))
    cap = max(1, min(batch if batch < 2 else batch // 2, want, batch))
    best = 1
    for d in range(1, cap + 1):
        if batch % d == 0:
            best = d
    return best


def spectral_conv1d(x, w_real, w_imag, modes, *, block_b=None):
    """x: (B, C, N) float32; w_real/w_imag: (C_in, C_out, modes) float32."""
    B, C, N = x.shape
    if block_b is None:
        block_b = _choose_block_b(B, C)
    assert B % block_b == 0

    # Forward rfft basis (sign = -1), truncated to `modes` bins, fused
    # column-wise into [cos | -sin]  ->  x @ F = [Xr | Xi].
    k = np.arange(modes)[None, :]
    n = np.arange(N)[:, None]
    ang = 2.0 * np.pi * k * n / N                              # (N, M)
    f_basis = np.concatenate([np.cos(ang), -np.sin(ang)], axis=1).astype(np.float32)

    # Inverse (irfft, length N) basis with Hermitian-symmetry weights, fused
    # row-wise into [c*cos/N ; -c*sin/N].  Weight 1 only for k == 0 and (even N
    # only) the true Nyquist bin k == N//2; every other retained bin counts twice.
    kk = np.arange(modes)
    cwt = np.where((kk == 0) | ((N % 2 == 0) & (kk == N // 2)), 1.0, 2.0)[:, None]
    ang_inv = 2.0 * np.pi * kk[:, None] * np.arange(N)[None, :] / N   # (M, N)
    g_basis = np.concatenate([cwt * np.cos(ang_inv) / N,
                              -cwt * np.sin(ang_inv) / N], axis=0).astype(np.float32)

    f_basis = jnp.asarray(f_basis)                             # (N, 2M)
    g_basis = jnp.asarray(g_basis)                             # (2M, N)

    # Pre-transpose weights to (modes, C_in, C_out) so the in-kernel mixing is
    # a dot_general batched over modes with no rank-3 broadcast temporaries.
    wr_t = jnp.transpose(w_real, (2, 0, 1))
    wi_t = jnp.transpose(w_imag, (2, 0, 1))

    flops = (2 * B * C * N * 2 * modes          # forward DFT
             + 8 * modes * B * C * C            # complex mixing (4 batched dots)
             + 2 * B * C * 2 * modes * N)       # inverse DFT
    bytes_accessed = 4 * (2 * B * C * N + 2 * 2 * modes * N + 2 * modes * C * C)

    grid = (B // block_b,)
    # NOTE: F/G/weights are grid-invariant (index_map always 0); at production
    # channel counts (C >= 256) tile the mixing over C_out blocks or
    # single-buffer the weights so double-buffered operands fit v7x's 64 MiB VMEM.
    return pl.pallas_call(
        spectral_conv1d_kernel,
        out_shape=jax.ShapeDtypeStruct((B, C, N), x.dtype),
        grid_spec=pltpu.PrefetchScalarGridSpec(
            num_scalar_prefetch=0,
            grid=grid,
            in_specs=[
                pl.BlockSpec((block_b, C, N), lambda b: (b, 0, 0)),   # x
                pl.BlockSpec((N, 2 * modes), lambda b: (0, 0)),       # F = [cos|-sin]
                pl.BlockSpec((modes, C, C), lambda b: (0, 0, 0)),     # W_real (M,Ci,Co)
                pl.BlockSpec((modes, C, C), lambda b: (0, 0, 0)),     # W_imag (M,Ci,Co)
                pl.BlockSpec((2 * modes, N), lambda b: (0, 0)),       # G = [gc;gs]
            ],
            out_specs=pl.BlockSpec((block_b, C, N), lambda b: (b, 0, 0)),
        ),
        compiler_params=pltpu.CompilerParams(
            dimension_semantics=("parallel",),
            vmem_limit_bytes=32 * 1024 * 1024,
        ),
        cost_estimate=pl.CostEstimate(
            flops=flops, transcendentals=0, bytes_accessed=bytes_accessed),
    )(x, f_basis, wr_t, wi_t, g_basis)


if __name__ == "__main__":
    # config.width = 4 channels, config.modes = 6, spatial length N = 16, batch 2.
    B, C, N, MODES = 2, 4, 16, 6

    key = jax.random.PRNGKey(0)
    kx, kr, ki = jax.random.split(key, 3)
    x = jax.random.normal(kx, (B, C, N), dtype=jnp.float32)

    # weights = scale * rand(C, C, modes, cfloat)  (deterministic synthetic init)
    scale = 1.0 / (C * C)
    w_real = scale * jax.random.uniform(kr, (C, C, MODES), dtype=jnp.float32)
    w_imag = scale * jax.random.uniform(ki, (C, C, MODES), dtype=jnp.float32)

    out = spectral_conv1d(x, w_real, w_imag, MODES)
    out = jax.block_until_ready(out)

    # Pure-JAX reference (mirrors the PyTorch forward exactly).
    x_ft = jnp.fft.rfft(x)
    w_c = w_real + 1j * w_imag
    out_ft = jnp.zeros((B, C, N // 2 + 1), dtype=jnp.complex64)
    out_ft = out_ft.at[:, :, :MODES].set(
        jnp.einsum('bix,iox->box', x_ft[:, :, :MODES], w_c))
    ref = jnp.fft.irfft(out_ft, n=N).astype(jnp.float32)

    assert np.allclose(np.asarray(out), np.asarray(ref), atol=1e-3), (
        float(np.max(np.abs(np.asarray(out) - np.asarray(ref)))))
    print("KERNEL_OK")
</pallas_src>

<mosaic_0001>
module attributes {stable_mosaic.version = 11 : i64} {
  func.func @spectral_conv1d_kernel(%arg0: i32, %arg1: memref<1x4x16xf32, #tpu.memory_space<vmem>>, %arg2: memref<16x12xf32, #tpu.memory_space<vmem>>, %arg3: memref<6x4x4xf32, #tpu.memory_space<vmem>>, %arg4: memref<6x4x4xf32, #tpu.memory_space<vmem>>, %arg5: memref<12x16xf32, #tpu.memory_space<vmem>>, %arg6: memref<1x4x16xf32, #tpu.memory_space<vmem>>) attributes {dimension_semantics = [#tpu.dimension_semantics<parallel>], iteration_bounds = array<i64: 2>, scalar_prefetch = 0 : i64, scratch_operands = 0 : i64, tpu.core_type = #tpu.core_type<tc>, window_params = [{transform_indices = @transform_0, window_bounds = array<i64: 1, 4, 16>}, {pipeline_mode = #tpu.pipeline_mode<synchronous>, transform_indices = @transform_1, window_bounds = array<i64: 16, 12>}, {pipeline_mode = #tpu.pipeline_mode<synchronous>, transform_indices = @transform_2, window_bounds = array<i64: 6, 4, 4>}, {pipeline_mode = #tpu.pipeline_mode<synchronous>, transform_indices = @transform_3, window_bounds = array<i64: 6, 4, 4>}, {pipeline_mode = #tpu.pipeline_mode<synchronous>, transform_indices = @transform_4, window_bounds = array<i64: 12, 16>}, {transform_indices = @transform_5, window_bounds = array<i64: 1, 4, 16>}]} {
    %c0 = arith.constant 0 : index
    %c0_0 = arith.constant 0 : index
    %c0_1 = arith.constant 0 : index
    %0 = vector.load %arg1[%c0, %c0_0, %c0_1] : memref<1x4x16xf32, #tpu.memory_space<vmem>>, vector<1x4x16xf32>
    %1 = vector.shape_cast %0 : vector<1x4x16xf32> to vector<4x16xf32>
    %c0_2 = arith.constant 0 : index
    %c0_3 = arith.constant 0 : index
    %2 = vector.load %arg2[%c0_2, %c0_3] : memref<16x12xf32, #tpu.memory_space<vmem>>, vector<16x12xf32>
    %c0_4 = arith.constant 0 : index
    %c0_5 = arith.constant 0 : index
    %3 = vector.load %arg5[%c0_4, %c0_5] : memref<12x16xf32, #tpu.memory_space<vmem>>, vector<12x16xf32>
    %c0_6 = arith.constant 0 : index
    %c0_7 = arith.constant 0 : index
    %c0_8 = arith.constant 0 : index
    %4 = vector.load %arg3[%c0_6, %c0_7, %c0_8] : memref<6x4x4xf32, #tpu.memory_space<vmem>>, vector<6x4x4xf32>
    %c0_9 = arith.constant 0 : index
    %c0_10 = arith.constant 0 : index
    %c0_11 = arith.constant 0 : index
    %5 = vector.load %arg4[%c0_9, %c0_10, %c0_11] : memref<6x4x4xf32, #tpu.memory_space<vmem>>, vector<6x4x4xf32>
    %cst = arith.constant dense<0.000000e+00> : vector<4x12xf32>
    %6 = tpu.matmul %1, %2, %cst {dimension_numbers = #tpu.dot_dimension_numbers<[1], [0], [0], [1], [0, 0, 1, 1], [], []>} : vector<4x16xf32>, vector<16x12xf32>, vector<4x12xf32> -> vector<4x12xf32>
    %7 = tpu.transpose %6, [1, 0] : vector<4x12xf32> -> vector<12x4xf32>
    %8 = vector.shape_cast %7 : vector<12x4xf32> to vector<12x1x4xf32>
    %9 = vector.extract_strided_slice %8 {offsets = [0, 0, 0], sizes = [6, 1, 4], strides = [1, 1, 1]} : vector<12x1x4xf32> to vector<6x1x4xf32>
    %10 = vector.extract_strided_slice %8 {offsets = [6, 0, 0], sizes = [6, 1, 4], strides = [1, 1, 1]} : vector<12x1x4xf32> to vector<6x1x4xf32>
    %cst_12 = arith.constant dense<0.000000e+00> : vector<6x1x4xf32>
    %11 = tpu.matmul %9, %4, %cst_12 {dimension_numbers = #tpu.dot_dimension_numbers<[2], [1], [1], [2], [0, 0, 0, 1, 1, 2], [0], [0]>} : vector<6x1x4xf32>, vector<6x4x4xf32>, vector<6x1x4xf32> -> vector<6x1x4xf32>
    %cst_13 = arith.constant dense<0.000000e+00> : vector<6x1x4xf32>
    %12 = tpu.matmul %10, %5, %cst_13 {dimension_numbers = #tpu.dot_dimension_numbers<[2], [1], [1], [2], [0, 0, 0, 1, 1, 2], [0], [0]>} : vector<6x1x4xf32>, vector<6x4x4xf32>, vector<6x1x4xf32> -> vector<6x1x4xf32>
    %cst_14 = arith.constant dense<0.000000e+00> : vector<6x1x4xf32>
    %13 = tpu.matmul %9, %5, %cst_14 {dimension_numbers = #tpu.dot_dimension_numbers<[2], [1], [1], [2], [0, 0, 0, 1, 1, 2], [0], [0]>} : vector<6x1x4xf32>, vector<6x4x4xf32>, vector<6x1x4xf32> -> vector<6x1x4xf32>
    %cst_15 = arith.constant dense<0.000000e+00> : vector<6x1x4xf32>
    %14 = tpu.matmul %10, %4, %cst_15 {dimension_numbers = #tpu.dot_dimension_numbers<[2], [1], [1], [2], [0, 0, 0, 1, 1, 2], [0], [0]>} : vector<6x1x4xf32>, vector<6x4x4xf32>, vector<6x1x4xf32> -> vector<6x1x4xf32>
    %15 = arith.subf %11, %12 : vector<6x1x4xf32>
    %16 = arith.addf %13, %14 : vector<6x1x4xf32>
    %17 = vector.shape_cast %15 : vector<6x1x4xf32> to vector<6x4xf32>
    %18 = vector.shape_cast %16 : vector<6x1x4xf32> to vector<6x4xf32>
    %19 = tpu.concatenate %17, %18 in 0 : vector<6x4xf32>, vector<6x4xf32> -> vector<12x4xf32>
    %20 = tpu.transpose %19, [1, 0] : vector<12x4xf32> -> vector<4x12xf32>
    %cst_16 = arith.constant dense<0.000000e+00> : vector<4x16xf32>
    %21 = tpu.matmul %20, %3, %cst_16 {dimension_numbers = #tpu.dot_dimension_numbers<[1], [0], [0], [1], [0, 0, 1, 1], [], []>} : vector<4x12xf32>, vector<12x16xf32>, vector<4x16xf32> -> vector<4x16xf32>
    %22 = vector.shape_cast %21 : vector<4x16xf32> to vector<1x4x16xf32>
    %c0_17 = arith.constant 0 : index
    %c0_18 = arith.constant 0 : index
    %c0_19 = arith.constant 0 : index
    %23 = vector.load %arg6[%c0_17, %c0_18, %c0_19] : memref<1x4x16xf32, #tpu.memory_space<vmem>>, vector<1x4x16xf32>
    tpu.vector_store %arg6[%c0_17, %c0_18, %c0_19], %22 {strides = array<i32>} : memref<1x4x16xf32, #tpu.memory_space<vmem>>, vector<1x4x16xf32>,
    return
  }
  func.func @transform_0(%arg0: i32) -> (i32, i32, i32) {
    %c0_i32 = arith.constant 0 : i32
    %c0_i32_0 = arith.constant 0 : i32
    %c0_i32_1 = arith.constant 0 : i32
    return %arg0, %c0_i32, %c0_i32_0 : i32, i32, i32
  }
  func.func @transform_1(%arg0: i32) -> (i32, i32) {
    %c0_i32 = arith.constant 0 : i32
    %c0_i32_0 = arith.constant 0 : i32
    %c0_i32_1 = arith.constant 0 : i32
    return %c0_i32, %c0_i32_0 : i32, i32
  }
  func.func @transform_2(%arg0: i32) -> (i32, i32, i32) {
    %c0_i32 = arith.constant 0 : i32
    %c0_i32_0 = arith.constant 0 : i32
    %c0_i32_1 = arith.constant 0 : i32
    %c0_i32_2 = arith.constant 0 : i32
    return %c0_i32, %c0_i32_0, %c0_i32_1 : i32, i32, i32
  }
  func.func @transform_3(%arg0: i32) -> (i32, i32, i32) {
    %c0_i32 = arith.constant 0 : i32
    %c0_i32_0 = arith.constant 0 : i32
    %c0_i32_1 = arith.constant 0 : i32
    %c0_i32_2 = arith.constant 0 : i32
    return %c0_i32, %c0_i32_0, %c0_i32_1 : i32, i32, i32
  }
  func.func @transform_4(%arg0: i32) -> (i32, i32) {
    %c0_i32 = arith.constant 0 : i32
    %c0_i32_0 = arith.constant 0 : i32
    %c0_i32_1 = arith.constant 0 : i32
    return %c0_i32, %c0_i32_0 : i32, i32
  }
  func.func @transform_5(%arg0: i32) -> (i32, i32, i32) {
    %c0_i32 = arith.constant 0 : i32
    %c0_i32_0 = arith.constant 0 : i32
    %c0_i32_1 = arith.constant 0 : i32
    return %arg0, %c0_i32, %c0_i32_0 : i32, i32, i32
  }
}

</mosaic_0001>

<llo_original>
// kernel: tpu_custom_call.1
$region0: #{tpu_custom_call.1}
  #allocation0 [shape = 'u32[]', space=smem, size = 0x4, offset = 0x4, fixed_abs, tag = 'smem constant byte address 0x4 - core index']
  #allocation1 [shape = 'u32[144,128]{1,0:T(1,128)}', space=vmem, size = 0x12000, scoped, tag = 'internal scratch']
  %s0 = inlined_call_operand.vmem [shape: f32[2,4,16], index: 0, kind: input, shape index: {}]
  %s1 = inlined_call_operand.vmem [shape: f32[16,12], index: 1, kind: input, shape index: {}]
  %s2 = inlined_call_operand.vmem [shape: f32[6,4,4], index: 2, kind: input, shape index: {}]
  %s3 = inlined_call_operand.vmem [shape: f32[6,4,4], index: 3, kind: input, shape index: {}]
  %s4 = inlined_call_operand.vmem [shape: f32[12,16], index: 4, kind: input, shape index: {}]
  %s5 = inlined_call_operand.hbm [shape: f32[2,4,16], index: 5, kind: output, shape index: {}]
  %s6 = sld [smem:[#allocation0]]
  $region53: #{tpu_custom_call.1} parent=0
    _
  %s8 = ssub.s32 1, %s6
  %s9 = scalar_select 0, %s8, %s6
  $region1: #{tpu_custom_call.1} parent=0
    #allocation2 [shape = 'u8[4096]{0}', space=vmem, size = 0x1000, scoped, tag = 'output window, operand 0']
    #allocation3 [shape = 's32[2]{0}', space=sflag, size = 0x8, scoped, tag = 'scoped memory for tpu_custom_call.1']
    %10 = vsyncpa [#allocation3], 0
    %s11 = scalar_lea.sflag [#allocation3], 1
    %12 = vsyncpa %s11, 0
    loop: start=0, step=1, limit=4
    $region2: #{tpu_custom_call.1} parent=1 // loop_pre_header
      _
    $region3: #{tpu_custom_call.1} parent=1 // loop_header
      %s14 = sphi 0, %s18
      %p15 = scmp.ge.s32.totalorder %s14, 4
      %s24 = sphi 0, %s26
      %s27 = sphi 0, %s24
      %s28 = sphi 0, %s27
      %s44 = sphi 0, %s28
      %s48 = sphi 0, %s48
      %s50 = sphi 0, %s48
      %s51 = sphi 0, %s50
      %s65 = sphi 0, %s51
      %s69 = sphi 0, %s69
      %s71 = sphi 0, %s69
      %s72 = sphi 0, %s71
      %s86 = sphi 0, %s72
      %s90 = sphi 0, %s90
      %s92 = sphi 0, %s90
      %s93 = sphi 0, %s92
      %s107 = sphi 0, %s93
      %s111 = sphi 0, %s111
      %s113 = sphi 0, %s111
      %s114 = sphi 0, %s113
      %s128 = sphi 0, %s114
      %s134 = sphi 0, %s136
      %s137 = sphi 0, %s134
      %s138 = sphi 0, %s137
      %s154 = sphi 0, %s138
    $region4: #{tpu_custom_call.1} parent=1 // loop_header_branch
      %17 = sbr.rel (%p15) target = $region8
    $region5: #{tpu_custom_call.1} parent=1 // loop_body
      %s19 = ssub.s32 %s14, 1
      %s20 = ssub.s32 %s14, 2
      %s21 = sadd.s32 %s14, 1
      %s22 = ssub.s32 %s14, %s21
      %p23 = scmp.eq.s32.totalorder %s22, 0
      %s25 = sadd.s32 %s24, 1
      %s26 = scalar_select %p23, %s24, %s25
      %p29 = pneg %p23
      %p30 = scmp.eq.s32.totalorder %s14, 1
      %p31 = por %p29, %p30
      %p32 = scmp.ne.s32.totalorder %s24, %s27
      %p33 = scmp.eq.s32.totalorder %s14, 0
      %p34 = por %p32, %p33
      %p35 = scmp.ne.s32.totalorder %s24, %s27
      %p36 = scmp.eq.s32.totalorder %s19, 1
      %p37 = por %p35, %p36
      %p38 = scmp.ne.s32.totalorder %s27, %s28
      %p39 = scmp.eq.s32.totalorder %s19, 0
      %p40 = por %p38, %p39
      %p41 = scmp.ne.s32.totalorder %s27, %s28
      %p42 = scmp.eq.s32.totalorder %s20, 1
      %p43 = por %p41, %p42
      %p45 = scmp.ne.s32.totalorder %s28, %s44
      %p46 = scmp.eq.s32.totalorder %s20, 0
      %p47 = por %p45, %p46
      %s49 = sadd.s32 %s48, 1
      %p52 = scmp.eq.s32.totalorder %s14, 1
      %p53 = scmp.ne.s32.totalorder %s48, %s50
      %p54 = scmp.eq.s32.totalorder %s14, 0
      %p55 = por %p53, %p54
      %p56 = scmp.ne.s32.totalorder %s48, %s50
      %p57 = scmp.eq.s32.totalorder %s19, 1
      %p58 = por %p56, %p57
      %p59 = scmp.ne.s32.totalorder %s50, %s51
      %p60 = scmp.eq.s32.totalorder %s19, 0
      %p61 = por %p59, %p60
      %p62 = scmp.ne.s32.totalorder %s50, %s51
      %p63 = scmp.eq.s32.totalorder %s20, 1
      %p64 = por %p62, %p63
      %p66 = scmp.ne.s32.totalorder %s51, %s65
      %p67 = scmp.eq.s32.totalorder %s20, 0
      %p68 = por %p66, %p67
      %s70 = sadd.s32 %s69, 1
      %p73 = scmp.eq.s32.totalorder %s14, 1
      %p74 = scmp.ne.s32.totalorder %s69, %s71
      %p75 = scmp.eq.s32.totalorder %s14, 0
      %p76 = por %p74, %p75
      %p77 = scmp.ne.s32.totalorder %s69, %s71
      %p78 = scmp.eq.s32.totalorder %s19, 1
      %p79 = por %p77, %p78
      %p80 = scmp.ne.s32.totalorder %s71, %s72
      %p81 = scmp.eq.s32.totalorder %s19, 0
      %p82 = por %p80, %p81
      %p83 = scmp.ne.s32.totalorder %s71, %s72
      %p84 = scmp.eq.s32.totalorder %s20, 1
      %p85 = por %p83, %p84
      %p87 = scmp.ne.s32.totalorder %s72, %s86
      %p88 = scmp.eq.s32.totalorder %s20, 0
      %p89 = por %p87, %p88
      %s91 = sadd.s32 %s90, 1
      %p94 = scmp.eq.s32.totalorder %s14, 1
      %p95 = scmp.ne.s32.totalorder %s90, %s92
      %p96 = scmp.eq.s32.totalorder %s14, 0
      %p97 = por %p95, %p96
      %p98 = scmp.ne.s32.totalorder %s90, %s92
      %p99 = scmp.eq.s32.totalorder %s19, 1
      %p100 = por %p98, %p99
      %p101 = scmp.ne.s32.totalorder %s92, %s93
      %p102 = scmp.eq.s32.totalorder %s19, 0
      %p103 = por %p101, %p102
      %p104 = scmp.ne.s32.totalorder %s92, %s93
      %p105 = scmp.eq.s32.totalorder %s20, 1
      %p106 = por %p104, %p105
      %p108 = scmp.ne.s32.totalorder %s93, %s107
      %p109 = scmp.eq.s32.totalorder %s20, 0
      %p110 = por %p108, %p109
      %s112 = sadd.s32 %s111, 1
      %p115 = scmp.eq.s32.totalorder %s14, 1
      %p116 = scmp.ne.s32.totalorder %s111, %s113
      %p117 = scmp.eq.s32.totalorder %s14, 0
      %p118 = por %p116, %p117
      %p119 = scmp.ne.s32.totalorder %s111, %s113
      %p120 = scmp.eq.s32.totalorder %s19, 1
      %p121 = por %p119, %p120
      %p122 = scmp.ne.s32.totalorder %s113, %s114
      %p123 = scmp.eq.s32.totalorder %s19, 0
      %p124 = por %p122, %p123
      %p125 = scmp.ne.s32.totalorder %s113, %s114
      %p126 = scmp.eq.s32.totalorder %s20, 1
      %p127 = por %p125, %p126
      %p129 = scmp.ne.s32.totalorder %s114, %s128
      %p130 = scmp.eq.s32.totalorder %s20, 0
      %p131 = por %p129, %p130
      %s132 = ssub.s32 %s14, %s21
      %p133 = scmp.eq.s32.totalorder %s132, 0
      %s135 = sadd.s32 %s134, 1
      %s136 = scalar_select %p133, %s134, %s135
      %p139 = pneg %p133
      %p140 = scmp.eq.s32.totalorder %s14, 1
      %p141 = por %p139, %p140
      %p142 = scmp.ne.s32.totalorder %s134, %s137
      %p143 = scmp.eq.s32.totalorder %s14, 0
      %p144 = por %p142, %p143
      %p145 = scmp.ne.s32.totalorder %s134, %s137
      %p146 = scmp.eq.s32.totalorder %s19, 1
      %p147 = por %p145, %p146
      %p148 = scmp.ne.s32.totalorder %s137, %s138
      %p149 = scmp.eq.s32.totalorder %s19, 0
      %p150 = por %p148, %p149
      %p151 = scmp.ne.s32.totalorder %s137, %s138
      %p152 = scmp.eq.s32.totalorder %s20, 1
      %p153 = por %p151, %p152
      %p155 = scmp.ne.s32.totalorder %s138, %s154
      %p156 = scmp.eq.s32.totalorder %s20, 0
      %p157 = por %p155, %p156
      %p158 = scmp.le.s32.totalorder 1, %s14
      %p159 = scmp.lt.s32.totalorder %s14, 3
      %p160 = pnand %p158, %p159
      %p161 = pneg %p160
      // Predicated region
      $region9: #{tpu_custom_call.1} parent=5 // pred_check
        _
      $region10: #{tpu_custom_call.1} parent=5 // pred_check_branch
        %163 = sbr.rel (%p160) target = $region12
      $region11: #{tpu_custom_call.1} parent=5 // pred_region
        %s164 = ssub.s32 %s14, 1
        // Predicated region
        $region13: #{tpu_custom_call.1} parent=11 // pred_check
          %p165 = pneg %p61
        $region14: #{tpu_custom_call.1} parent=11 // pred_check_branch
          %167 = sbr.rel (%p165) target = $region16
        $region15: #{tpu_custom_call.1} parent=11 // pred_region
          _
        $region16: #{tpu_custom_call.1} parent=11 // pred_fallthru
          _
        // Predicated region
        $region17: #{tpu_custom_call.1} parent=11 // pred_check
          %p168 = pneg %p82
        $region18: #{tpu_custom_call.1} parent=11 // pred_check_branch
          %170 = sbr.rel (%p168) target = $region20
        $region19: #{tpu_custom_call.1} parent=11 // pred_region
          _
        $region20: #{tpu_custom_call.1} parent=11 // pred_fallthru
          _
        // Predicated region
        $region21: #{tpu_custom_call.1} parent=11 // pred_check
          %p171 = pneg %p103
        $region22: #{tpu_custom_call.1} parent=11 // pred_check_branch
          %173 = sbr.rel (%p171) target = $region24
        $region23: #{tpu_custom_call.1} parent=11 // pred_region
          _
        $region24: #{tpu_custom_call.1} parent=11 // pred_fallthru
          _
        // Predicated region
        $region25: #{tpu_custom_call.1} parent=11 // pred_check
          %p174 = pneg %p124
        $region26: #{tpu_custom_call.1} parent=11 // pred_check_branch
          %176 = sbr.rel (%p174) target = $region28
        $region27: #{tpu_custom_call.1} parent=11 // pred_region
          _
        $region28: #{tpu_custom_call.1} parent=11 // pred_fallthru
          _
      $region12: #{tpu_custom_call.1} parent=5 // pred_fallthru
        _
      %p177 = scmp.lt.s32.totalorder %s14, 2
      // Predicated region
      $region29: #{tpu_custom_call.1} parent=5 // pred_check
        %p178 = pneg %p177
      $region30: #{tpu_custom_call.1} parent=5 // pred_check_branch
        %180 = sbr.rel (%p178) target = $region32
      $region31: #{tpu_custom_call.1} parent=5 // pred_region
        // Predicated region
        $region33: #{tpu_custom_call.1} parent=31 // pred_check
          %p181 = pneg %p34
        $region34: #{tpu_custom_call.1} parent=31 // pred_check_branch
          %183 = sbr.rel (%p181) target = $region36
        $region35: #{tpu_custom_call.1} parent=31 // pred_region
          %p184 = scmp.lt.s32.totalorder %s14, 1
          %s185 = scalar_select %p184, %s14, 1
          %s186 = smul.addr %s185, 4
          %s187 = scalar_lea.vmem %s0, %s186
        $region36: #{tpu_custom_call.1} parent=31 // pred_fallthru
          _
      $region32: #{tpu_custom_call.1} parent=5 // pred_fallthru
        _
      %p188 = scmp.le.s32.totalorder 1, %s14
      %p189 = scmp.lt.s32.totalorder %s14, 3
      %p190 = pnand %p188, %p189
      %p191 = pneg %p190
      // Predicated region
      $region37: #{tpu_custom_call.1} parent=5 // pred_check
        _
      $region38: #{tpu_custom_call.1} parent=5 // pred_check_branch
        %193 = sbr.rel (%p190) target = $region40
      $region39: #{tpu_custom_call.1} parent=5 // pred_region
        %s194 = ssub.s32 %s14, 1
        %p195 = scmp.lt.s32.totalorder %s19, 1
        %s196 = scalar_select %p195, %s19, 1
        %s197 = smul.addr %s196, 4
        %s198 = scalar_lea.vmem %s0, %s197
        %p199 = pneg %p40
        %p200 = pneg %p37
        %p201 = pneg %p61
        %p202 = pneg %p58
        %p203 = pneg %p82
        %p204 = pneg %p79
        %p205 = pneg %p103
        %p206 = pneg %p100
        %p207 = pneg %p124
        %p208 = pneg %p121
        %p209 = pneg %p150
        %p210 = pneg %p147
        %s211 = sand.u32 %s137, 1
        %s212 = scalar_lea.sflag [#allocation3], %s211
        %s213 = sand.u32 %s137, 1
        %s214 = smul.addr %s213, 4
        %s215 = scalar_lea.vmem [#allocation2], %s214
        %p216 = scmp.lt.s32.totalorder %s19, 1
        %s217 = scalar_select %p216, %s19, 1
        %s218 = smul.addr %s217, 4
        %s219 = scalar_lea.vmem %s0, %s218
        %v220 = vld [vmem:[%s219] sm:$0xf]
        %v221 = vld [vmem:[%s1] sm:$0xff]
        %v222 = vld [vmem:[%s1 + $0x8] sm:$0xff]
        %v223 = vld [vmem:[%s4] sm:$0xff]
        %v224 = vld [vmem:[%s4 + $0x8] sm:$0xf]
        %v225 = vld [vmem:[%s2] sm:$0xf]
        %v226 = vld [vmem:[%s2 + $0x4] sm:$0xf]
        %v227 = vld [vmem:[%s2 + $0x8] sm:$0xf]
        %v228 = vld [vmem:[%s2 + $0xc] sm:$0xf]
        %v229 = vld [vmem:[%s2 + $0x10] sm:$0xf]
        %v230 = vld [vmem:[%s2 + $0x14] sm:$0xf]
        %v231 = vld [vmem:[%s3] sm:$0xf]
        %v232 = vld [vmem:[%s3 + $0x4] sm:$0xf]
        %v233 = vld [vmem:[%s3 + $0x8] sm:$0xf]
        %v234 = vld [vmem:[%s3 + $0xc] sm:$0xf]
        %v235 = vld [vmem:[%s3 + $0x10] sm:$0xf]
        %v236 = vld [vmem:[%s3 + $0x14] sm:$0xf]
        %vm237 = vcmask 130048
        %v239 = vsel %vm237, %v220, 0
        %241 = vmatprep.subr.mxu0 0.0
        %242 = vmatpush1.msra.mxu0 %v221
        %243 = vmatprep.subr.mxu0 0.0
        %244 = vmatpush1.msra.mxu0 %v222
        %245 = vmatprep.subr.mxu0 0.0
        %246 = vmatpush1.msra.mxu0 0.0
        %247 = vmatprep.subr.mxu0 0.0
        %248 = vmatpush1.msra.mxu0 0.0
        %249 = vmatprep.subr.mxu0 0.0
        %250 = vmatpush1.msra.mxu0 0.0
        %251 = vmatprep.subr.mxu0 0.0
        %252 = vmatpush1.msra.mxu0 0.0
        %253 = vmatprep.subr.mxu0 0.0
        %254 = vmatpush1.msra.mxu0 0.0
        %255 = vmatprep.subr.mxu0 0.0
        %256 = vmatpush1.msra.mxu0 0.0
        %257 = vmatprep.subr.mxu0 0.0
        %258 = vmatpush1.msra.mxu0 0.0
        %259 = vmatprep.subr.mxu0 0.0
        %260 = vmatpush1.msra.mxu0 0.0
        %261 = vmatprep.subr.mxu0 0.0
        %262 = vmatpush1.msra.mxu0 0.0
        %263 = vmatprep.subr.mxu0 0.0
        %264 = vmatpush1.msra.mxu0 0.0
        %265 = vmatprep.subr.mxu0 0.0
        %266 = vmatpush1.msra.mxu0 0.0
        %267 = vmatprep.subr.mxu0 0.0
        %268 = vmatpush1.msra.mxu0 0.0
        %269 = vmatprep.subr.mxu0 0.0
        %270 = vmatpush1.msra.mxu0 0.0
        %271 = vmatprep.subr.mxu0 0.0
        %272 = vmatpush1.msra.mxu0 0.0
        %273 = vmatprep.subr.mxu0 0.0
        %274 = vmatpush1.msra.mxu0 0.0
        %275 = vmatprep.subr.mxu0 0.0
        %276 = vmatpush1.msra.mxu0 0.0
        %277 = vmatprep.subr.mxu0 0.0
        %278 = vmatpush1.msra.mxu0 0.0
        %279 = vmatprep.subr.mxu0 0.0
        %280 = vmatpush1.msra.mxu0 0.0
        %281 = vmatprep.subr.mxu0 0.0
        %282 = vmatpush1.msra.mxu0 0.0
        %283 = vmatprep.subr.mxu0 0.0
        %284 = vmatpush1.msra.mxu0 0.0
        %285 = vmatprep.subr.mxu0 0.0
        %286 = vmatpush1.msra.mxu0 0.0
        %287 = vmatprep.subr.mxu0 0.0
        %288 = vmatpush1.msra.mxu0 0.0
        %289 = vmatprep.subr.mxu0 0.0
        %290 = vmatpush1.msra.mxu0 0.0
        %291 = vmatprep.subr.mxu0 0.0
        %292 = vmatpush1.msra.mxu0 0.0
        %293 = vmatprep.subr.mxu0 0.0
        %294 = vmatpush1.msra.mxu0 0.0
        %295 = vmatprep.subr.mxu0 0.0
        %296 = vmatpush1.msra.mxu0 0.0
        %297 = vmatprep.subr.mxu0 0.0
        %298 = vmatpush1.msra.mxu0 0.0
        %299 = vmatprep.subr.mxu0 0.0
        %300 = vmatpush1.msra.mxu0 0.0
        %301 = vmatprep.subr.mxu0 0.0
        %302 = vmatpush1.msra.mxu0 0.0
        %303 = vmatprep.subr.mxu0 0.0
        %304 = vmatpush1.msra.mxu0 0.0
        %305 = vmatprep.mubr.f32.mxu0 0.0
        %306 = vmatmul.mubr.f32.gmra.mrb[0].mxu0 %v239
        %v307 = vpop.f32.mrb[0].mxu0
        %v308 = vadd.f32 0.0, %v307
        %v309 = vpop.f32.mrb[0].mxu0
        %310 = vdwg.mxu0
        %311 = vxpose.xlu0.b32.start [1/16] %v308, 128
        %312 = vxpose.xlu0.b32.cont [2/16] 0.0, 128
        %313 = vxpose.xlu0.b32.cont [3/16] 0.0, 128
        %314 = vxpose.xlu0.b32.cont [4/16] 0.0, 128
        %315 = vxpose.xlu0.b32.cont [5/16] 0.0, 128
        %316 = vxpose.xlu0.b32.cont [6/16] 0.0, 128
        %317 = vxpose.xlu0.b32.cont [7/16] 0.0, 128
        %318 = vxpose.xlu0.b32.cont [8/16] 0.0, 128
        %319 = vxpose.xlu0.b32.cont [9/16] 0.0, 128
        %320 = vxpose.xlu0.b32.cont [10/16] 0.0, 128
        %321 = vxpose.xlu0.b32.cont [11/16] 0.0, 128
        %322 = vxpose.xlu0.b32.cont [12/16] 0.0, 128
        %323 = vxpose.xlu0.b32.cont [13/16] 0.0, 128
        %324 = vxpose.xlu0.b32.cont [14/16] 0.0, 128
        %325 = vxpose.xlu0.b32.cont [15/16] 0.0, 128
        %326 = vxpose.xlu0.b32.end [16/16] 0.0, 128
        %v327 = vpop.trf.xlu0
        %v328 = vpop.trf.xlu0
        %v329 = vpop.trf.xlu0
        %v330 = vpop.trf.xlu0
        %v331 = vpop.trf.xlu0
        %v332 = vpop.trf.xlu0
        %v333 = vpop.trf.xlu0
        %v334 = vpop.trf.xlu0
        %v335 = vpop.trf.xlu0
        %v336 = vpop.trf.xlu0
        %v337 = vpop.trf.xlu0
        %v338 = vpop.trf.xlu0
        %v339 = vpop.trf.xlu0
        %v340 = vpop.trf.xlu0
        %v341 = vpop.trf.xlu0
        %v342 = vpop.trf.xlu0
        %v345 = vcombine.high %v327, %v327
        %v347 = vunpack.c.l.s4 1966171168
        %v348 = vunpack.c.0.s8 %v347
        %v349 = vlaneseq
        %v350 = vshrl.u32 %v349, 7
        %v351 = vsub.s32 %v348, %v350
        %v352 = vrot.slane %v327, %v351
        %v354 = vunpack.c.l.s4 1966171168
        %v355 = vunpack.c.0.s8 %v354
        %v356 = vlaneseq
        %v357 = vshrl.u32 %v356, 7
        %v358 = vsub.s32 %v355, %v357
        %v359 = vrot.slane %v345, %v358
        %v360 = vcombine.high %v352, %v352
        %v361 = vcombine.high %v359, %v359
        %v363 = vunpack.c.l.s4 1966171168
        %v364 = vunpack.c.0.s8 %v363
        %v365 = vlaneseq
        %v366 = vshrl.u32 %v365, 7
        %v367 = vsub.s32 %v364, %v366
        %v368 = vrot.slane %v352, %v367
        %v370 = vunpack.c.l.s4 1966171168
        %v371 = vunpack.c.0.s8 %v370
        %v372 = vlaneseq
        %v373 = vshrl.u32 %v372, 7
        %v374 = vsub.s32 %v371, %v373
        %v375 = vrot.slane %v359, %v374
        %v377 = vunpack.c.l.s4 1966171168
        %v378 = vunpack.c.0.s8 %v377
        %v379 = vlaneseq
        %v380 = vshrl.u32 %v379, 7
        %v381 = vsub.s32 %v378, %v380
        %v382 = vrot.slane %v360, %v381
        %v384 = vunpack.c.l.s4 1966171168
        %v385 = vunpack.c.0.s8 %v384
        %v386 = vlaneseq
        %v387 = vshrl.u32 %v386, 7
        %v388 = vsub.s32 %v385, %v387
        %v389 = vrot.slane %v361, %v388
        %v390 = vcombine.high %v368, %v368
        %v391 = vcombine.high %v375, %v375
        %v392 = vcombine.high %v382, %v382
        %v393 = vcombine.high %v389, %v389
        %v395 = vunpack.c.l.s4 1966171168
        %v396 = vunpack.c.0.s8 %v395
        %v397 = vlaneseq
        %v398 = vshrl.u32 %v397, 7
        %v399 = vsub.s32 %v396, %v398
        %v400 = vrot.slane %v328, %v399
        %v401 = vcombine.high %v400, %v400
        %v403 = vunpack.c.l.s4 1966171168
        %v404 = vunpack.c.0.s8 %v403
        %v405 = vlaneseq
        %v406 = vshrl.u32 %v405, 7
        %v407 = vsub.s32 %v404, %v406
        %v408 = vrot.slane %v400, %v407
        %v410 = vunpack.c.l.s4 1966171168
        %v411 = vunpack.c.0.s8 %v410
        %v412 = vlaneseq
        %v413 = vshrl.u32 %v412, 7
        %v414 = vsub.s32 %v411, %v413
        %v415 = vrot.slane %v401, %v414
        %v416 = vcombine.high %v408, %v408
        %v417 = vcombine.high %v415, %v415
        %vm418 = vcmask 31744
        %v419 = vsel %vm418, %v368, 0
        %vm421 = vcmask 1043456
        %v423 = vsel %vm421, %v225, 0
        %425 = vmatprep.subr.mxu0 0.0
        %426 = vmatpush1.msra.mxu0 %v423
        %427 = vmatprep.subr.mxu0 0.0
        %428 = vmatpush1.msra.mxu0 0.0
        %429 = vmatprep.subr.mxu0 0.0
        %430 = vmatpush1.msra.mxu0 0.0
        %431 = vmatprep.subr.mxu0 0.0
        %432 = vmatpush1.msra.mxu0 0.0
        %433 = vmatprep.subr.mxu0 0.0
        %434 = vmatpush1.msra.mxu0 0.0
        %435 = vmatprep.subr.mxu0 0.0
        %436 = vmatpush1.msra.mxu0 0.0
        %437 = vmatprep.subr.mxu0 0.0
        %438 = vmatpush1.msra.mxu0 0.0
        %439 = vmatprep.subr.mxu0 0.0
        %440 = vmatpush1.msra.mxu0 0.0
        %441 = vmatprep.subr.mxu0 0.0
        %442 = vmatpush1.msra.mxu0 0.0
        %443 = vmatprep.subr.mxu0 0.0
        %444 = vmatpush1.msra.mxu0 0.0
        %445 = vmatprep.subr.mxu0 0.0
        %446 = vmatpush1.msra.mxu0 0.0
        %447 = vmatprep.subr.mxu0 0.0
        %448 = vmatpush1.msra.mxu0 0.0
        %449 = vmatprep.subr.mxu0 0.0
        %450 = vmatpush1.msra.mxu0 0.0
        %451 = vmatprep.subr.mxu0 0.0
        %452 = vmatpush1.msra.mxu0 0.0
        %453 = vmatprep.subr.mxu0 0.0
        %454 = vmatpush1.msra.mxu0 0.0
        %455 = vmatprep.subr.mxu0 0.0
        %456 = vmatpush1.msra.mxu0 0.0
        %457 = vmatprep.subr.mxu0 0.0
        %458 = vmatpush1.msra.mxu0 0.0
        %459 = vmatprep.subr.mxu0 0.0
        %460 = vmatpush1.msra.mxu0 0.0
        %461 = vmatprep.subr.mxu0 0.0
        %462 = vmatpush1.msra.mxu0 0.0
        %463 = vmatprep.subr.mxu0 0.0
        %464 = vmatpush1.msra.mxu0 0.0
        %465 = vmatprep.subr.mxu0 0.0
        %466 = vmatpush1.msra.mxu0 0.0
        %467 = vmatprep.subr.mxu0 0.0
        %468 = vmatpush1.msra.mxu0 0.0
        %469 = vmatprep.subr.mxu0 0.0
        %470 = vmatpush1.msra.mxu0 0.0
        %471 = vmatprep.subr.mxu0 0.0
        %472 = vmatpush1.msra.mxu0 0.0
        %473 = vmatprep.subr.mxu0 0.0
        %474 = vmatpush1.msra.mxu0 0.0
        %475 = vmatprep.subr.mxu0 0.0
        %476 = vmatpush1.msra.mxu0 0.0
        %477 = vmatprep.subr.mxu0 0.0
        %478 = vmatpush1.msra.mxu0 0.0
        %479 = vmatprep.subr.mxu0 0.0
        %480 = vmatpush1.msra.mxu0 0.0
        %481 = vmatprep.subr.mxu0 0.0
        %482 = vmatpush1.msra.mxu0 0.0
        %483 = vmatprep.subr.mxu0 0.0
        %484 = vmatpush1.msra.mxu0 0.0
        %485 = vmatprep.subr.mxu0 0.0
        %486 = vmatpush1.msra.mxu0 0.0
        %487 = vmatprep.subr.mxu0 0.0
        %488 = vmatpush1.msra.mxu0 0.0
        %489 = vmatprep.mubr.f32.mxu0 0.0
        %490 = vmatmul.mubr.f32.gmra.mrb[0].mxu0 %v419
        %v491 = vpop.f32.mrb[0].mxu0
        %v492 = vadd.f32 0.0, %v491
        %v493 = vpop.f32.mrb[0].mxu0
        %494 = vdwg.mxu0
        %v495 = vsel %vm418, %v382, 0
        %v498 = vsel %vm421, %v226, 0
        %500 = vmatprep.subr.mxu0 0.0
        %501 = vmatpush1.msra.mxu0 %v498
        %502 = vmatprep.subr.mxu0 0.0
        %503 = vmatpush1.msra.mxu0 0.0
        %504 = vmatprep.subr.mxu0 0.0
        %505 = vmatpush1.msra.mxu0 0.0
        %506 = vmatprep.subr.mxu0 0.0
        %507 = vmatpush1.msra.mxu0 0.0
        %508 = vmatprep.subr.mxu0 0.0
        %509 = vmatpush1.msra.mxu0 0.0
        %510 = vmatprep.subr.mxu0 0.0
        %511 = vmatpush1.msra.mxu0 0.0
        %512 = vmatprep.subr.mxu0 0.0
        %513 = vmatpush1.msra.mxu0 0.0
        %514 = vmatprep.subr.mxu0 0.0
        %515 = vmatpush1.msra.mxu0 0.0
        %516 = vmatprep.subr.mxu0 0.0
        %517 = vmatpush1.msra.mxu0 0.0
        %518 = vmatprep.subr.mxu0 0.0
        %519 = vmatpush1.msra.mxu0 0.0
        %520 = vmatprep.subr.mxu0 0.0
        %521 = vmatpush1.msra.mxu0 0.0
        %522 = vmatprep.subr.mxu0 0.0
        %523 = vmatpush1.msra.mxu0 0.0
        %524 = vmatprep.subr.mxu0 0.0
        %525 = vmatpush1.msra.mxu0 0.0
        %526 = vmatprep.subr.mxu0 0.0
        %527 = vmatpush1.msra.mxu0 0.0
        %528 = vmatprep.subr.mxu0 0.0
        %529 = vmatpush1.msra.mxu0 0.0
        %530 = vmatprep.subr.mxu0 0.0
        %531 = vmatpush1.msra.mxu0 0.0
        %532 = vmatprep.subr.mxu0 0.0
        %533 = vmatpush1.msra.mxu0 0.0
        %534 = vmatprep.subr.mxu0 0.0
        %535 = vmatpush1.msra.mxu0 0.0
        %536 = vmatprep.subr.mxu0 0.0
        %537 = vmatpush1.msra.mxu0 0.0
        %538 = vmatprep.subr.mxu0 0.0
        %539 = vmatpush1.msra.mxu0 0.0
        %540 = vmatprep.subr.mxu0 0.0
        %541 = vmatpush1.msra.mxu0 0.0
        %542 = vmatprep.subr.mxu0 0.0
        %543 = vmatpush1.msra.mxu0 0.0
        %544 = vmatprep.subr.mxu0 0.0
        %545 = vmatpush1.msra.mxu0 0.0
        %546 = vmatprep.subr.mxu0 0.0
        %547 = vmatpush1.msra.mxu0 0.0
        %548 = vmatprep.subr.mxu0 0.0
        %549 = vmatpush1.msra.mxu0 0.0
        %550 = vmatprep.subr.mxu0 0.0
        %551 = vmatpush1.msra.mxu0 0.0
        %552 = vmatprep.subr.mxu0 0.0
        %553 = vmatpush1.msra.mxu0 0.0
        %554 = vmatprep.subr.mxu0 0.0
        %555 = vmatpush1.msra.mxu0 0.0
        %556 = vmatprep.subr.mxu0 0.0
        %557 = vmatpush1.msra.mxu0 0.0
        %558 = vmatprep.subr.mxu0 0.0
        %559 = vmatpush1.msra.mxu0 0.0
        %560 = vmatprep.subr.mxu0 0.0
        %561 = vmatpush1.msra.mxu0 0.0
        %562 = vmatprep.subr.mxu0 0.0
        %563 = vmatpush1.msra.mxu0 0.0
        %564 = vmatprep.mubr.f32.mxu0 0.0
        %565 = vmatmul.mubr.f32.gmra.mrb[0].mxu0 %v495
        %v566 = vpop.f32.mrb[0].mxu0
        %v567 = vadd.f32 0.0, %v566
        %v568 = vpop.f32.mrb[0].mxu0
        %569 = vdwg.mxu0
        %v570 = vsel %vm418, %v390, 0
        %v573 = vsel %vm421, %v227, 0
        %575 = vmatprep.subr.mxu0 0.0
        %576 = vmatpush1.msra.mxu0 %v573
        %577 = vmatprep.subr.mxu0 0.0
        %578 = vmatpush1.msra.mxu0 0.0
        %579 = vmatprep.subr.mxu0 0.0
        %580 = vmatpush1.msra.mxu0 0.0
        %581 = vmatprep.subr.mxu0 0.0
        %582 = vmatpush1.msra.mxu0 0.0
        %583 = vmatprep.subr.mxu0 0.0
        %584 = vmatpush1.msra.mxu0 0.0
        %585 = vmatprep.subr.mxu0 0.0
        %586 = vmatpush1.msra.mxu0 0.0
        %587 = vmatprep.subr.mxu0 0.0
        %588 = vmatpush1.msra.mxu0 0.0
        %589 = vmatprep.subr.mxu0 0.0
        %590 = vmatpush1.msra.mxu0 0.0
        %591 = vmatprep.subr.mxu0 0.0
        %592 = vmatpush1.msra.mxu0 0.0
        %593 = vmatprep.subr.mxu0 0.0
        %594 = vmatpush1.msra.mxu0 0.0
        %595 = vmatprep.subr.mxu0 0.0
        %596 = vmatpush1.msra.mxu0 0.0
        %597 = vmatprep.subr.mxu0 0.0
        %598 = vmatpush1.msra.mxu0 0.0
        %599 = vmatprep.subr.mxu0 0.0
        %600 = vmatpush1.msra.mxu0 0.0
        %601 = vmatprep.subr.mxu0 0.0
        %602 = vmatpush1.msra.mxu0 0.0
        %603 = vmatprep.subr.mxu0 0.0
        %604 = vmatpush1.msra.mxu0 0.0
        %605 = vmatprep.subr.mxu0 0.0
        %606 = vmatpush1.msra.mxu0 0.0
        %607 = vmatprep.subr.mxu0 0.0
        %608 = vmatpush1.msra.mxu0 0.0
        %609 = vmatprep.subr.mxu0 0.0
        %610 = vmatpush1.msra.mxu0 0.0
        %611 = vmatprep.subr.mxu0 0.0
        %612 = vmatpush1.msra.mxu0 0.0
        %613 = vmatprep.subr.mxu0 0.0
        %614 = vmatpush1.msra.mxu0 0.0
        %615 = vmatprep.subr.mxu0 0.0
        %616 = vmatpush1.msra.mxu0 0.0
        %617 = vmatprep.subr.mxu0 0.0
        %618 = vmatpush1.msra.mxu0 0.0
        %619 = vmatprep.subr.mxu0 0.0
        %620 = vmatpush1.msra.mxu0 0.0
        %621 = vmatprep.subr.mxu0 0.0
        %622 = vmatpush1.msra.mxu0 0.0
        %623 = vmatprep.subr.mxu0 0.0
        %624 = vmatpush1.msra.mxu0 0.0
        %625 = vmatprep.subr.mxu0 0.0
        %626 = vmatpush1.msra.mxu0 0.0
        %627 = vmatprep.subr.mxu0 0.0
        %628 = vmatpush1.msra.mxu0 0.0
        %629 = vmatprep.subr.mxu0 0.0
        %630 = vmatpush1.msra.mxu0 0.0
        %631 = vmatprep.subr.mxu0 0.0
        %632 = vmatpush1.msra.mxu0 0.0
        %633 = vmatprep.subr.mxu0 0.0
        %634 = vmatpush1.msra.mxu0 0.0
        %635 = vmatprep.subr.mxu0 0.0
        %636 = vmatpush1.msra.mxu0 0.0
        %637 = vmatprep.subr.mxu0 0.0
        %638 = vmatpush1.msra.mxu0 0.0
        %639 = vmatprep.mubr.f32.mxu0 0.0
        %640 = vmatmul.mubr.f32.gmra.mrb[0].mxu0 %v570
        %v641 = vpop.f32.mrb[0].mxu0
        %v642 = vadd.f32 0.0, %v641
        %v643 = vpop.f32.mrb[0].mxu0
        %644 = vdwg.mxu0
        %v645 = vsel %vm418, %v392, 0
        %v648 = vsel %vm421, %v228, 0
        %650 = vmatprep.subr.mxu0 0.0
        %651 = vmatpush1.msra.mxu0 %v648
        %652 = vmatprep.subr.mxu0 0.0
        %653 = vmatpush1.msra.mxu0 0.0
        %654 = vmatprep.subr.mxu0 0.0
        %655 = vmatpush1.msra.mxu0 0.0
        %656 = vmatprep.subr.mxu0 0.0
        %657 = vmatpush1.msra.mxu0 0.0
        %658 = vmatprep.subr.mxu0 0.0
        %659 = vmatpush1.msra.mxu0 0.0
        %660 = vmatprep.subr.mxu0 0.0
        %661 = vmatpush1.msra.mxu0 0.0
        %662 = vmatprep.subr.mxu0 0.0
        %663 = vmatpush1.msra.mxu0 0.0
        %664 = vmatprep.subr.mxu0 0.0
        %665 = vmatpush1.msra.mxu0 0.0
        %666 = vmatprep.subr.mxu0 0.0
        %667 = vmatpush1.msra.mxu0 0.0
        %668 = vmatprep.subr.mxu0 0.0
        %669 = vmatpush1.msra.mxu0 0.0
        %670 = vmatprep.subr.mxu0 0.0
        %671 = vmatpush1.msra.mxu0 0.0
        %672 = vmatprep.subr.mxu0 0.0
        %673 = vmatpush1.msra.mxu0 0.0
        %674 = vmatprep.subr.mxu0 0.0
        %675 = vmatpush1.msra.mxu0 0.0
        %676 = vmatprep.subr.mxu0 0.0
        %677 = vmatpush1.msra.mxu0 0.0
        %678 = vmatprep.subr.mxu0 0.0
        %679 = vmatpush1.msra.mxu0 0.0
        %680 = vmatprep.subr.mxu0 0.0
        %681 = vmatpush1.msra.mxu0 0.0
        %682 = vmatprep.subr.mxu0 0.0
        %683 = vmatpush1.msra.mxu0 0.0
        %684 = vmatprep.subr.mxu0 0.0
        %685 = vmatpush1.msra.mxu0 0.0
        %686 = vmatprep.subr.mxu0 0.0
        %687 = vmatpush1.msra.mxu0 0.0
        %688 = vmatprep.subr.mxu0 0.0
        %689 = vmatpush1.msra.mxu0 0.0
        %690 = vmatprep.subr.mxu0 0.0
        %691 = vmatpush1.msra.mxu0 0.0
        %692 = vmatprep.subr.mxu0 0.0
        %693 = vmatpush1.msra.mxu0 0.0
        %694 = vmatprep.subr.mxu0 0.0
        %695 = vmatpush1.msra.mxu0 0.0
        %696 = vmatprep.subr.mxu0 0.0
        %697 = vmatpush1.msra.mxu0 0.0
        %698 = vmatprep.subr.mxu0 0.0
        %699 = vmatpush1.msra.mxu0 0.0
        %700 = vmatprep.subr.mxu0 0.0
        %701 = vmatpush1.msra.mxu0 0.0
        %702 = vmatprep.subr.mxu0 0.0
        %703 = vmatpush1.msra.mxu0 0.0
        %704 = vmatprep.subr.mxu0 0.0
        %705 = vmatpush1.msra.mxu0 0.0
        %706 = vmatprep.subr.mxu0 0.0
        %707 = vmatpush1.msra.mxu0 0.0
        %708 = vmatprep.subr.mxu0 0.0
        %709 = vmatpush1.msra.mxu0 0.0
        %710 = vmatprep.subr.mxu0 0.0
        %711 = vmatpush1.msra.mxu0 0.0
        %712 = vmatprep.subr.mxu0 0.0
        %713 = vmatpush1.msra.mxu0 0.0
        %714 = vmatprep.mubr.f32.mxu0 0.0
        %715 = vmatmul.mubr.f32.gmra.mrb[0].mxu0 %v645
        %v716 = vpop.f32.mrb[0].mxu0
        %v717 = vadd.f32 0.0, %v716
        %v718 = vpop.f32.mrb[0].mxu0
        %719 = vdwg.mxu0
        %v720 = vsel %vm418, %v375, 0
        %v723 = vsel %vm421, %v229, 0
        %725 = vmatprep.subr.mxu0 0.0
        %726 = vmatpush1.msra.mxu0 %v723
        %727 = vmatprep.subr.mxu0 0.0
        %728 = vmatpush1.msra.mxu0 0.0
        %729 = vmatprep.subr.mxu0 0.0
        %730 = vmatpush1.msra.mxu0 0.0
        %731 = vmatprep.subr.mxu0 0.0
        %732 = vmatpush1.msra.mxu0 0.0
        %733 = vmatprep.subr.mxu0 0.0
        %734 = vmatpush1.msra.mxu0 0.0
        %735 = vmatprep.subr.mxu0 0.0
        %736 = vmatpush1.msra.mxu0 0.0
        %737 = vmatprep.subr.mxu0 0.0
        %738 = vmatpush1.msra.mxu0 0.0
        %739 = vmatprep.subr.mxu0 0.0
        %740 = vmatpush1.msra.mxu0 0.0
        %741 = vmatprep.subr.mxu0 0.0
        %742 = vmatpush1.msra.mxu0 0.0
        %743 = vmatprep.subr.mxu0 0.0
        %744 = vmatpush1.msra.mxu0 0.0
        %745 = vmatprep.subr.mxu0 0.0
        %746 = vmatpush1.msra.mxu0 0.0
        %747 = vmatprep.subr.mxu0 0.0
        %748 = vmatpush1.msra.mxu0 0.0
        %749 = vmatprep.subr.mxu0 0.0
        %750 = vmatpush1.msra.mxu0 0.0
        %751 = vmatprep.subr.mxu0 0.0
        %752 = vmatpush1.msra.mxu0 0.0
        %753 = vmatprep.subr.mxu0 0.0
        %754 = vmatpush1.msra.mxu0 0.0
        %755 = vmatprep.subr.mxu0 0.0
        %756 = vmatpush1.msra.mxu0 0.0
        %757 = vmatprep.subr.mxu0 0.0
        %758 = vmatpush1.msra.mxu0 0.0
        %759 = vmatprep.subr.mxu0 0.0
        %760 = vmatpush1.msra.mxu0 0.0
        %761 = vmatprep.subr.mxu0 0.0
        %762 = vmatpush1.msra.mxu0 0.0
        %763 = vmatprep.subr.mxu0 0.0
        %764 = vmatpush1.msra.mxu0 0.0
        %765 = vmatprep.subr.mxu0 0.0
        %766 = vmatpush1.msra.mxu0 0.0
        %767 = vmatprep.subr.mxu0 0.0
        %768 = vmatpush1.msra.mxu0 0.0
        %769 = vmatprep.subr.mxu0 0.0
        %770 = vmatpush1.msra.mxu0 0.0
        %771 = vmatprep.subr.mxu0 0.0
        %772 = vmatpush1.msra.mxu0 0.0
        %773 = vmatprep.subr.mxu0 0.0
        %774 = vmatpush1.msra.mxu0 0.0
        %775 = vmatprep.subr.mxu0 0.0
        %776 = vmatpush1.msra.mxu0 0.0
        %777 = vmatprep.subr.mxu0 0.0
        %778 = vmatpush1.msra.mxu0 0.0
        %779 = vmatprep.subr.mxu0 0.0
        %780 = vmatpush1.msra.mxu0 0.0
        %781 = vmatprep.subr.mxu0 0.0
        %782 = vmatpush1.msra.mxu0 0.0
        %783 = vmatprep.subr.mxu0 0.0
        %784 = vmatpush1.msra.mxu0 0.0
        %785 = vmatprep.subr.mxu0 0.0
        %786 = vmatpush1.msra.mxu0 0.0
        %787 = vmatprep.subr.mxu0 0.0
        %788 = vmatpush1.msra.mxu0 0.0
        %789 = vmatprep.mubr.f32.mxu0 0.0
        %790 = vmatmul.mubr.f32.gmra.mrb[0].mxu0 %v720
        %v791 = vpop.f32.mrb[0].mxu0
        %v792 = vadd.f32 0.0, %v791
        %v793 = vpop.f32.mrb[0].mxu0
        %794 = vdwg.mxu0
        %v795 = vsel %vm418, %v389, 0
        %v798 = vsel %vm421, %v230, 0
        %800 = vmatprep.subr.mxu0 0.0
        %801 = vmatpush1.msra.mxu0 %v798
        %802 = vmatprep.subr.mxu0 0.0
        %803 = vmatpush1.msra.mxu0 0.0
        %804 = vmatprep.subr.mxu0 0.0
        %805 = vmatpush1.msra.mxu0 0.0
        %806 = vmatprep.subr.mxu0 0.0
        %807 = vmatpush1.msra.mxu0 0.0
        %808 = vmatprep.subr.mxu0 0.0
        %809 = vmatpush1.msra.mxu0 0.0
        %810 = vmatprep.subr.mxu0 0.0
        %811 = vmatpush1.msra.mxu0 0.0
        %812 = vmatprep.subr.mxu0 0.0
        %813 = vmatpush1.msra.mxu0 0.0
        %814 = vmatprep.subr.mxu0 0.0
        %815 = vmatpush1.msra.mxu0 0.0
        %816 = vmatprep.subr.mxu0 0.0
        %817 = vmatpush1.msra.mxu0 0.0
        %818 = vmatprep.subr.mxu0 0.0
        %819 = vmatpush1.msra.mxu0 0.0
        %820 = vmatprep.subr.mxu0 0.0
        %821 = vmatpush1.msra.mxu0 0.0
        %822 = vmatprep.subr.mxu0 0.0
        %823 = vmatpush1.msra.mxu0 0.0
        %824 = vmatprep.subr.mxu0 0.0
        %825 = vmatpush1.msra.mxu0 0.0
        %826 = vmatprep.subr.mxu0 0.0
        %827 = vmatpush1.msra.mxu0 0.0
        %828 = vmatprep.subr.mxu0 0.0
        %829 = vmatpush1.msra.mxu0 0.0
        %830 = vmatprep.subr.mxu0 0.0
        %831 = vmatpush1.msra.mxu0 0.0
        %832 = vmatprep.subr.mxu0 0.0
        %833 = vmatpush1.msra.mxu0 0.0
        %834 = vmatprep.subr.mxu0 0.0
        %835 = vmatpush1.msra.mxu0 0.0
        %836 = vmatprep.subr.mxu0 0.0
        %837 = vmatpush1.msra.mxu0 0.0
        %838 = vmatprep.subr.mxu0 0.0
        %839 = vmatpush1.msra.mxu0 0.0
        %840 = vmatprep.subr.mxu0 0.0
        %841 = vmatpush1.msra.mxu0 0.0
        %842 = vmatprep.subr.mxu0 0.0
        %843 = vmatpush1.msra.mxu0 0.0
        %844 = vmatprep.subr.mxu0 0.0
        %845 = vmatpush1.msra.mxu0 0.0
        %846 = vmatprep.subr.mxu0 0.0
        %847 = vmatpush1.msra.mxu0 0.0
        %848 = vmatprep.subr.mxu0 0.0
        %849 = vmatpush1.msra.mxu0 0.0
        %850 = vmatprep.subr.mxu0 0.0
        %851 = vmatpush1.msra.mxu0 0.0
        %852 = vmatprep.subr.mxu0 0.0
        %853 = vmatpush1.msra.mxu0 0.0
        %854 = vmatprep.subr.mxu0 0.0
        %855 = vmatpush1.msra.mxu0 0.0
        %856 = vmatprep.subr.mxu0 0.0
        %857 = vmatpush1.msra.mxu0 0.0
        %858 = vmatprep.subr.mxu0 0.0
        %859 = vmatpush1.msra.mxu0 0.0
        %860 = vmatprep.subr.mxu0 0.0
        %861 = vmatpush1.msra.mxu0 0.0
        %862 = vmatprep.subr.mxu0 0.0
        %863 = vmatpush1.msra.mxu0 0.0
        %864 = vmatprep.mubr.f32.mxu0 0.0
        %865 = vmatmul.mubr.f32.gmra.mrb[0].mxu0 %v795
        %v866 = vpop.f32.mrb[0].mxu0
        %v867 = vadd.f32 0.0, %v866
        %v868 = vpop.f32.mrb[0].mxu0
        %869 = vdwg.mxu0
        %v870 = vsel %vm418, %v391, 0
        %v873 = vsel %vm421, %v231, 0
        %875 = vmatprep.subr.mxu0 0.0
        %876 = vmatpush1.msra.mxu0 %v873
        %877 = vmatprep.subr.mxu0 0.0
        %878 = vmatpush1.msra.mxu0 0.0
        %879 = vmatprep.subr.mxu0 0.0
        %880 = vmatpush1.msra.mxu0 0.0
        %881 = vmatprep.subr.mxu0 0.0
        %882 = vmatpush1.msra.mxu0 0.0
        %883 = vmatprep.subr.mxu0 0.0
        %884 = vmatpush1.msra.mxu0 0.0
        %885 = vmatprep.subr.mxu0 0.0
        %886 = vmatpush1.msra.mxu0 0.0
        %887 = vmatprep.subr.mxu0 0.0
        %888 = vmatpush1.msra.mxu0 0.0
        %889 = vmatprep.subr.mxu0 0.0
        %890 = vmatpush1.msra.mxu0 0.0
        %891 = vmatprep.subr.mxu0 0.0
        %892 = vmatpush1.msra.mxu0 0.0
        %893 = vmatprep.subr.mxu0 0.0
        %894 = vmatpush1.msra.mxu0 0.0
        %895 = vmatprep.subr.mxu0 0.0
        %896 = vmatpush1.msra.mxu0 0.0
        %897 = vmatprep.subr.mxu0 0.0
        %898 = vmatpush1.msra.mxu0 0.0
        %899 = vmatprep.subr.mxu0 0.0
        %900 = vmatpush1.msra.mxu0 0.0
        %901 = vmatprep.subr.mxu0 0.0
        %902 = vmatpush1.msra.mxu0 0.0
        %903 = vmatprep.subr.mxu0 0.0
        %904 = vmatpush1.msra.mxu0 0.0
        %905 = vmatprep.subr.mxu0 0.0
        %906 = vmatpush1.msra.mxu0 0.0
        %907 = vmatprep.subr.mxu0 0.0
        %908 = vmatpush1.msra.mxu0 0.0
        %909 = vmatprep.subr.mxu0 0.0
        %910 = vmatpush1.msra.mxu0 0.0
        %911 = vmatprep.subr.mxu0 0.0
        %912 = vmatpush1.msra.mxu0 0.0
        %913 = vmatprep.subr.mxu0 0.0
        %914 = vmatpush1.msra.mxu0 0.0
        %915 = vmatprep.subr.mxu0 0.0
        %916 = vmatpush1.msra.mxu0 0.0
        %917 = vmatprep.subr.mxu0 0.0
        %918 = vmatpush1.msra.mxu0 0.0
        %919 = vmatprep.subr.mxu0 0.0
        %920 = vmatpush1.msra.mxu0 0.0
        %921 = vmatprep.subr.mxu0 0.0
        %922 = vmatpush1.msra.mxu0 0.0
        %923 = vmatprep.subr.mxu0 0.0
        %924 = vmatpush1.msra.mxu0 0.0
        %925 = vmatprep.subr.mxu0 0.0
        %926 = vmatpush1.msra.mxu0 0.0
        %927 = vmatprep.subr.mxu0 0.0
        %928 = vmatpush1.msra.mxu0 0.0
        %929 = vmatprep.subr.mxu0 0.0
        %930 = vmatpush1.msra.mxu0 0.0
        %931 = vmatprep.subr.mxu0 0.0
        %932 = vmatpush1.msra.mxu0 0.0
        %933 = vmatprep.subr.mxu0 0.0
        %934 = vmatpush1.msra.mxu0 0.0
        %935 = vmatprep.subr.mxu0 0.0
        %936 = vmatpush1.msra.mxu0 0.0
        %937 = vmatprep.subr.mxu0 0.0
        %938 = vmatpush1.msra.mxu0 0.0
        %939 = vmatprep.mubr.f32.mxu0 0.0
        %940 = vmatmul.mubr.f32.gmra.mrb[0].mxu0 %v870
        %v941 = vpop.f32.mrb[0].mxu0
        %v942 = vadd.f32 0.0, %v941
        %v943 = vpop.f32.mrb[0].mxu0
        %944 = vdwg.mxu0
        %v945 = vsel %vm418, %v393, 0
        %v948 = vsel %vm421, %v232, 0
        %950 = vmatprep.subr.mxu0 0.0
        %951 = vmatpush1.msra.mxu0 %v948
        %952 = vmatprep.subr.mxu0 0.0
        %953 = vmatpush1.msra.mxu0 0.0
        %954 = vmatprep.subr.mxu0 0.0
        %955 = vmatpush1.msra.mxu0 0.0
        %956 = vmatprep.subr.mxu0 0.0
        %957 = vmatpush1.msra.mxu0 0.0
        %958 = vmatprep.subr.mxu0 0.0
        %959 = vmatpush1.msra.mxu0 0.0
        %960 = vmatprep.subr.mxu0 0.0
        %961 = vmatpush1.msra.mxu0 0.0
        %962 = vmatprep.subr.mxu0 0.0
        %963 = vmatpush1.msra.mxu0 0.0
        %964 = vmatprep.subr.mxu0 0.0
        %965 = vmatpush1.msra.mxu0 0.0
        %966 = vmatprep.subr.mxu0 0.0
        %967 = vmatpush1.msra.mxu0 0.0
        %968 = vmatprep.subr.mxu0 0.0
        %969 = vmatpush1.msra.mxu0 0.0
        %970 = vmatprep.subr.mxu0 0.0
        %971 = vmatpush1.msra.mxu0 0.0
        %972 = vmatprep.subr.mxu0 0.0
        %973 = vmatpush1.msra.mxu0 0.0
        %974 = vmatprep.subr.mxu0 0.0
        %975 = vmatpush1.msra.mxu0 0.0
        %976 = vmatprep.subr.mxu0 0.0
        %977 = vmatpush1.msra.mxu0 0.0
        %978 = vmatprep.subr.mxu0 0.0
        %979 = vmatpush1.msra.mxu0 0.0
        %980 = vmatprep.subr.mxu0 0.0
        %981 = vmatpush1.msra.mxu0 0.0
        %982 = vmatprep.subr.mxu0 0.0
        %983 = vmatpush1.msra.mxu0 0.0
        %984 = vmatprep.subr.mxu0 0.0
        %985 = vmatpush1.msra.mxu0 0.0
        %986 = vmatprep.subr.mxu0 0.0
        %987 = vmatpush1.msra.mxu0 0.0
        %988 = vmatprep.subr.mxu0 0.0
        %989 = vmatpush1.msra.mxu0 0.0
        %990 = vmatprep.subr.mxu0 0.0
        %991 = vmatpush1.msra.mxu0 0.0
        %992 = vmatprep.subr.mxu0 0.0
        %993 = vmatpush1.msra.mxu0 0.0
        %994 = vmatprep.subr.mxu0 0.0
        %995 = vmatpush1.msra.mxu0 0.0
        %996 = vmatprep.subr.mxu0 0.0
        %997 = vmatpush1.msra.mxu0 0.0
        %998 = vmatprep.subr.mxu0 0.0
        %999 = vmatpush1.msra.mxu0 0.0
        %1000 = vmatprep.subr.mxu0 0.0
        %1001 = vmatpush1.msra.mxu0 0.0
        %1002 = vmatprep.subr.mxu0 0.0
        %1003 = vmatpush1.msra.mxu0 0.0
        %1004 = vmatprep.subr.mxu0 0.0
        %1005 = vmatpush1.msra.mxu0 0.0
        %1006 = vmatprep.subr.mxu0 0.0
        %1007 = vmatpush1.msra.mxu0 0.0
        %1008 = vmatprep.subr.mxu0 0.0
        %1009 = vmatpush1.msra.mxu0 0.0
        %1010 = vmatprep.subr.mxu0 0.0
        %1011 = vmatpush1.msra.mxu0 0.0
        %1012 = vmatprep.subr.mxu0 0.0
        %1013 = vmatpush1.msra.mxu0 0.0
        %1014 = vmatprep.mubr.f32.mxu0 0.0
        %1015 = vmatmul.mubr.f32.gmra.mrb[0].mxu0 %v945
        %v1016 = vpop.f32.mrb[0].mxu0
        %v1017 = vadd.f32 0.0, %v1016
        %v1018 = vpop.f32.mrb[0].mxu0
        %1019 = vdwg.mxu0
        %v1020 = vsel %vm418, %v408, 0
        %v1023 = vsel %vm421, %v233, 0
        %1025 = vmatprep.subr.mxu0 0.0
        %1026 = vmatpush1.msra.mxu0 %v1023
        %1027 = vmatprep.subr.mxu0 0.0
        %1028 = vmatpush1.msra.mxu0 0.0
        %1029 = vmatprep.subr.mxu0 0.0
        %1030 = vmatpush1.msra.mxu0 0.0
        %1031 = vmatprep.subr.mxu0 0.0
        %1032 = vmatpush1.msra.mxu0 0.0
        %1033 = vmatprep.subr.mxu0 0.0
        %1034 = vmatpush1.msra.mxu0 0.0
        %1035 = vmatprep.subr.mxu0 0.0
        %1036 = vmatpush1.msra.mxu0 0.0
        %1037 = vmatprep.subr.mxu0 0.0
        %1038 = vmatpush1.msra.mxu0 0.0
        %1039 = vmatprep.subr.mxu0 0.0
        %1040 = vmatpush1.msra.mxu0 0.0
        %1041 = vmatprep.subr.mxu0 0.0
        %1042 = vmatpush1.msra.mxu0 0.0
        %1043 = vmatprep.subr.mxu0 0.0
        %1044 = vmatpush1.msra.mxu0 0.0
        %1045 = vmatprep.subr.mxu0 0.0
        %1046 = vmatpush1.msra.mxu0 0.0
        %1047 = vmatprep.subr.mxu0 0.0
        %1048 = vmatpush1.msra.mxu0 0.0
        %1049 = vmatprep.subr.mxu0 0.0
        %1050 = vmatpush1.msra.mxu0 0.0
        %1051 = vmatprep.subr.mxu0 0.0
        %1052 = vmatpush1.msra.mxu0 0.0
        %1053 = vmatprep.subr.mxu0 0.0
        %1054 = vmatpush1.msra.mxu0 0.0
        %1055 = vmatprep.subr.mxu0 0.0
        %1056 = vmatpush1.msra.mxu0 0.0
        %1057 = vmatprep.subr.mxu0 0.0
        %1058 = vmatpush1.msra.mxu0 0.0
        %1059 = vmatprep.subr.mxu0 0.0
        %1060 = vmatpush1.msra.mxu0 0.0
        %1061 = vmatprep.subr.mxu0 0.0
        %1062 = vmatpush1.msra.mxu0 0.0
        %1063 = vmatprep.subr.mxu0 0.0
        %1064 = vmatpush1.msra.mxu0 0.0
        %1065 = vmatprep.subr.mxu0 0.0
        %1066 = vmatpush1.msra.mxu0 0.0
        %1067 = vmatprep.subr.mxu0 0.0
        %1068 = vmatpush1.msra.mxu0 0.0
        %1069 = vmatprep.subr.mxu0 0.0
        %1070 = vmatpush1.msra.mxu0 0.0
        %1071 = vmatprep.subr.mxu0 0.0
        %1072 = vmatpush1.msra.mxu0 0.0
        %1073 = vmatprep.subr.mxu0 0.0
        %1074 = vmatpush1.msra.mxu0 0.0
        %1075 = vmatprep.subr.mxu0 0.0
        %1076 = vmatpush1.msra.mxu0 0.0
        %1077 = vmatprep.subr.mxu0 0.0
        %1078 = vmatpush1.msra.mxu0 0.0
        %1079 = vmatprep.subr.mxu0 0.0
        %1080 = vmatpush1.msra.mxu0 0.0
        %1081 = vmatprep.subr.mxu0 0.0
        %1082 = vmatpush1.msra.mxu0 0.0
        %1083 = vmatprep.subr.mxu0 0.0
        %1084 = vmatpush1.msra.mxu0 0.0
        %1085 = vmatprep.subr.mxu0 0.0
        %1086 = vmatpush1.msra.mxu0 0.0
        %1087 = vmatprep.subr.mxu0 0.0
        %1088 = vmatpush1.msra.mxu0 0.0
        %1089 = vmatprep.mubr.f32.mxu0 0.0
        %1090 = vmatmul.mubr.f32.gmra.mrb[0].mxu0 %v1020
        %v1091 = vpop.f32.mrb[0].mxu0
        %v1092 = vadd.f32 0.0, %v1091
        %v1093 = vpop.f32.mrb[0].mxu0
        %1094 = vdwg.mxu0
        %v1095 = vsel %vm418, %v415, 0
        %v1098 = vsel %vm421, %v234, 0
        %1100 = vmatprep.subr.mxu0 0.0
        %1101 = vmatpush1.msra.mxu0 %v1098
        %1102 = vmatprep.subr.mxu0 0.0
        %1103 = vmatpush1.msra.mxu0 0.0
        %1104 = vmatprep.subr.mxu0 0.0
        %1105 = vmatpush1.msra.mxu0 0.0
        %1106 = vmatprep.subr.mxu0 0.0
        %1107 = vmatpush1.msra.mxu0 0.0
        %1108 = vmatprep.subr.mxu0 0.0
        %1109 = vmatpush1.msra.mxu0 0.0
        %1110 = vmatprep.subr.mxu0 0.0
        %1111 = vmatpush1.msra.mxu0 0.0
        %1112 = vmatprep.subr.mxu0 0.0
        %1113 = vmatpush1.msra.mxu0 0.0
        %1114 = vmatprep.subr.mxu0 0.0
        %1115 = vmatpush1.msra.mxu0 0.0
        %1116 = vmatprep.subr.mxu0 0.0
        %1117 = vmatpush1.msra.mxu0 0.0
        %1118 = vmatprep.subr.mxu0 0.0
        %1119 = vmatpush1.msra.mxu0 0.0
        %1120 = vmatprep.subr.mxu0 0.0
        %1121 = vmatpush1.msra.mxu0 0.0
        %1122 = vmatprep.subr.mxu0 0.0
        %1123 = vmatpush1.msra.mxu0 0.0
        %1124 = vmatprep.subr.mxu0 0.0
        %1125 = vmatpush1.msra.mxu0 0.0
        %1126 = vmatprep.subr.mxu0 0.0
        %1127 = vmatpush1.msra.mxu0 0.0
        %1128 = vmatprep.subr.mxu0 0.0
        %1129 = vmatpush1.msra.mxu0 0.0
        %1130 = vmatprep.subr.mxu0 0.0
        %1131 = vmatpush1.msra.mxu0 0.0
        %1132 = vmatprep.subr.mxu0 0.0
        %1133 = vmatpush1.msra.mxu0 0.0
        %1134 = vmatprep.subr.mxu0 0.0
        %1135 = vmatpush1.msra.mxu0 0.0
        %1136 = vmatprep.subr.mxu0 0.0
        %1137 = vmatpush1.msra.mxu0 0.0
        %1138 = vmatprep.subr.mxu0 0.0
        %1139 = vmatpush1.msra.mxu0 0.0
        %1140 = vmatprep.subr.mxu0 0.0
        %1141 = vmatpush1.msra.mxu0 0.0
        %1142 = vmatprep.subr.mxu0 0.0
        %1143 = vmatpush1.msra.mxu0 0.0
        %1144 = vmatprep.subr.mxu0 0.0
        %1145 = vmatpush1.msra.mxu0 0.0
        %1146 = vmatprep.subr.mxu0 0.0
        %1147 = vmatpush1.msra.mxu0 0.0
        %1148 = vmatprep.subr.mxu0 0.0
        %1149 = vmatpush1.msra.mxu0 0.0
        %1150 = vmatprep.subr.mxu0 0.0
        %1151 = vmatpush1.msra.mxu0 0.0
        %1152 = vmatprep.subr.mxu0 0.0
        %1153 = vmatpush1.msra.mxu0 0.0
        %1154 = vmatprep.subr.mxu0 0.0
        %1155 = vmatpush1.msra.mxu0 0.0
        %1156 = vmatprep.subr.mxu0 0.0
        %1157 = vmatpush1.msra.mxu0 0.0
        %1158 = vmatprep.subr.mxu0 0.0
        %1159 = vmatpush1.msra.mxu0 0.0
        %1160 = vmatprep.subr.mxu0 0.0
        %1161 = vmatpush1.msra.mxu0 0.0
        %1162 = vmatprep.subr.mxu0 0.0
        %1163 = vmatpush1.msra.mxu0 0.0
        %1164 = vmatprep.mubr.f32.mxu0 0.0
        %1165 = vmatmul.mubr.f32.gmra.mrb[0].mxu0 %v1095
        %v1166 = vpop.f32.mrb[0].mxu0
        %v1167 = vadd.f32 0.0, %v1166
        %v1168 = vpop.f32.mrb[0].mxu0
        %1169 = vdwg.mxu0
        %v1170 = vsel %vm418, %v416, 0
        %v1173 = vsel %vm421, %v235, 0
        %1175 = vmatprep.subr.mxu0 0.0
        %1176 = vmatpush1.msra.mxu0 %v1173
        %1177 = vmatprep.subr.mxu0 0.0
        %1178 = vmatpush1.msra.mxu0 0.0
        %1179 = vmatprep.subr.mxu0 0.0
        %1180 = vmatpush1.msra.mxu0 0.0
        %1181 = vmatprep.subr.mxu0 0.0
        %1182 = vmatpush1.msra.mxu0 0.0
        %1183 = vmatprep.subr.mxu0 0.0
        %1184 = vmatpush1.msra.mxu0 0.0
        %1185 = vmatprep.subr.mxu0 0.0
        %1186 = vmatpush1.msra.mxu0 0.0
        %1187 = vmatprep.subr.mxu0 0.0
        %1188 = vmatpush1.msra.mxu0 0.0
        %1189 = vmatprep.subr.mxu0 0.0
        %1190 = vmatpush1.msra.mxu0 0.0
        %1191 = vmatprep.subr.mxu0 0.0
        %1192 = vmatpush1.msra.mxu0 0.0
        %1193 = vmatprep.subr.mxu0 0.0
        %1194 = vmatpush1.msra.mxu0 0.0
        %1195 = vmatprep.subr.mxu0 0.0
        %1196 = vmatpush1.msra.mxu0 0.0
        %1197 = vmatprep.subr.mxu0 0.0
        %1198 = vmatpush1.msra.mxu0 0.0
        %1199 = vmatprep.subr.mxu0 0.0
        %1200 = vmatpush1.msra.mxu0 0.0
        %1201 = vmatprep.subr.mxu0 0.0
        %1202 = vmatpush1.msra.mxu0 0.0
        %1203 = vmatprep.subr.mxu0 0.0
        %1204 = vmatpush1.msra.mxu0 0.0
        %1205 = vmatprep.subr.mxu0 0.0
        %1206 = vmatpush1.msra.mxu0 0.0
        %1207 = vmatprep.subr.mxu0 0.0
        %1208 = vmatpush1.msra.mxu0 0.0
        %1209 = vmatprep.subr.mxu0 0.0
        %1210 = vmatpush1.msra.mxu0 0.0
        %1211 = vmatprep.subr.mxu0 0.0
        %1212 = vmatpush1.msra.mxu0 0.0
        %1213 = vmatprep.subr.mxu0 0.0
        %1214 = vmatpush1.msra.mxu0 0.0
        %1215 = vmatprep.subr.mxu0 0.0
        %1216 = vmatpush1.msra.mxu0 0.0
        %1217 = vmatprep.subr.mxu0 0.0
        %1218 = vmatpush1.msra.mxu0 0.0
        %1219 = vmatprep.subr.mxu0 0.0
        %1220 = vmatpush1.msra.mxu0 0.0
        %1221 = vmatprep.subr.mxu0 0.0
        %1222 = vmatpush1.msra.mxu0 0.0
        %1223 = vmatprep.subr.mxu0 0.0
        %1224 = vmatpush1.msra.mxu0 0.0
        %1225 = vmatprep.subr.mxu0 0.0
        %1226 = vmatpush1.msra.mxu0 0.0
        %1227 = vmatprep.subr.mxu0 0.0
        %1228 = vmatpush1.msra.mxu0 0.0
        %1229 = vmatprep.subr.mxu0 0.0
        %1230 = vmatpush1.msra.mxu0 0.0
        %1231 = vmatprep.subr.mxu0 0.0
        %1232 = vmatpush1.msra.mxu0 0.0
        %1233 = vmatprep.subr.mxu0 0.0
        %1234 = vmatpush1.msra.mxu0 0.0
        %1235 = vmatprep.subr.mxu0 0.0
        %1236 = vmatpush1.msra.mxu0 0.0
        %1237 = vmatprep.subr.mxu0 0.0
        %1238 = vmatpush1.msra.mxu0 0.0
        %1239 = vmatprep.mubr.f32.mxu0 0.0
        %1240 = vmatmul.mubr.f32.gmra.mrb[0].mxu0 %v1170
        %v1241 = vpop.f32.mrb[0].mxu0
        %v1242 = vadd.f32 0.0, %v1241
        %v1243 = vpop.f32.mrb[0].mxu0
        %1244 = vdwg.mxu0
        %v1245 = vsel %vm418, %v417, 0
        %v1248 = vsel %vm421, %v236, 0
        %1250 = vmatprep.subr.mxu0 0.0
        %1251 = vmatpush1.msra.mxu0 %v1248
        %1252 = vmatprep.subr.mxu0 0.0
        %1253 = vmatpush1.msra.mxu0 0.0
        %1254 = vmatprep.subr.mxu0 0.0
        %1255 = vmatpush1.msra.mxu0 0.0
        %1256 = vmatprep.subr.mxu0 0.0
        %1257 = vmatpush1.msra.mxu0 0.0
        %1258 = vmatprep.subr.mxu0 0.0
        %1259 = vmatpush1.msra.mxu0 0.0
        %1260 = vmatprep.subr.mxu0 0.0
        %1261 = vmatpush1.msra.mxu0 0.0
        %1262 = vmatprep.subr.mxu0 0.0
        %1263 = vmatpush1.msra.mxu0 0.0
        %1264 = vmatprep.subr.mxu0 0.0
        %1265 = vmatpush1.msra.mxu0 0.0
        %1266 = vmatprep.subr.mxu0 0.0
        %1267 = vmatpush1.msra.mxu0 0.0
        %1268 = vmatprep.subr.mxu0 0.0
        %1269 = vmatpush1.msra.mxu0 0.0
        %1270 = vmatprep.subr.mxu0 0.0
        %1271 = vmatpush1.msra.mxu0 0.0
        %1272 = vmatprep.subr.mxu0 0.0
        %1273 = vmatpush1.msra.mxu0 0.0
        %1274 = vmatprep.subr.mxu0 0.0
        %1275 = vmatpush1.msra.mxu0 0.0
        %1276 = vmatprep.subr.mxu0 0.0
        %1277 = vmatpush1.msra.mxu0 0.0
        %1278 = vmatprep.subr.mxu0 0.0
        %1279 = vmatpush1.msra.mxu0 0.0
        %1280 = vmatprep.subr.mxu0 0.0
        %1281 = vmatpush1.msra.mxu0 0.0
        %1282 = vmatprep.subr.mxu0 0.0
        %1283 = vmatpush1.msra.mxu0 0.0
        %1284 = vmatprep.subr.mxu0 0.0
        %1285 = vmatpush1.msra.mxu0 0.0
        %1286 = vmatprep.subr.mxu0 0.0
        %1287 = vmatpush1.msra.mxu0 0.0
        %1288 = vmatprep.subr.mxu0 0.0
        %1289 = vmatpush1.msra.mxu0 0.0
        %1290 = vmatprep.subr.mxu0 0.0
        %1291 = vmatpush1.msra.mxu0 0.0
        %1292 = vmatprep.subr.mxu0 0.0
        %1293 = vmatpush1.msra.mxu0 0.0
        %1294 = vmatprep.subr.mxu0 0.0
        %1295 = vmatpush1.msra.mxu0 0.0
        %1296 = vmatprep.subr.mxu0 0.0
        %1297 = vmatpush1.msra.mxu0 0.0
        %1298 = vmatprep.subr.mxu0 0.0
        %1299 = vmatpush1.msra.mxu0 0.0
        %1300 = vmatprep.subr.mxu0 0.0
        %1301 = vmatpush1.msra.mxu0 0.0
        %1302 = vmatprep.subr.mxu0 0.0
        %1303 = vmatpush1.msra.mxu0 0.0
        %1304 = vmatprep.subr.mxu0 0.0
        %1305 = vmatpush1.msra.mxu0 0.0
        %1306 = vmatprep.subr.mxu0 0.0
        %1307 = vmatpush1.msra.mxu0 0.0
        %1308 = vmatprep.subr.mxu0 0.0
        %1309 = vmatpush1.msra.mxu0 0.0
        %1310 = vmatprep.subr.mxu0 0.0
        %1311 = vmatpush1.msra.mxu0 0.0
        %1312 = vmatprep.subr.mxu0 0.0
        %1313 = vmatpush1.msra.mxu0 0.0
        %1314 = vmatprep.mubr.f32.mxu0 0.0
        %1315 = vmatmul.mubr.f32.gmra.mrb[0].mxu0 %v1245
        %v1316 = vpop.f32.mrb[0].mxu0
        %v1317 = vadd.f32 0.0, %v1316
        %v1318 = vpop.f32.mrb[0].mxu0
        %1319 = vdwg.mxu0
        %1320 = vmatprep.subr.mxu0 0.0
        %1321 = vmatpush1.msra.mxu0 %v423
        %1322 = vmatprep.subr.mxu0 0.0
        %1323 = vmatpush1.msra.mxu0 0.0
        %1324 = vmatprep.subr.mxu0 0.0
        %1325 = vmatpush1.msra.mxu0 0.0
        %1326 = vmatprep.subr.mxu0 0.0
        %1327 = vmatpush1.msra.mxu0 0.0
        %1328 = vmatprep.subr.mxu0 0.0
        %1329 = vmatpush1.msra.mxu0 0.0
        %1330 = vmatprep.subr.mxu0 0.0
        %1331 = vmatpush1.msra.mxu0 0.0
        %1332 = vmatprep.subr.mxu0 0.0
        %1333 = vmatpush1.msra.mxu0 0.0
        %1334 = vmatprep.subr.mxu0 0.0
        %1335 = vmatpush1.msra.mxu0 0.0
        %1336 = vmatprep.subr.mxu0 0.0
        %1337 = vmatpush1.msra.mxu0 0.0
        %1338 = vmatprep.subr.mxu0 0.0
        %1339 = vmatpush1.msra.mxu0 0.0
        %1340 = vmatprep.subr.mxu0 0.0
        %1341 = vmatpush1.msra.mxu0 0.0
        %1342 = vmatprep.subr.mxu0 0.0
        %1343 = vmatpush1.msra.mxu0 0.0
        %1344 = vmatprep.subr.mxu0 0.0
        %1345 = vmatpush1.msra.mxu0 0.0
        %1346 = vmatprep.subr.mxu0 0.0
        %1347 = vmatpush1.msra.mxu0 0.0
        %1348 = vmatprep.subr.mxu0 0.0
        %1349 = vmatpush1.msra.mxu0 0.0
        %1350 = vmatprep.subr.mxu0 0.0
        %1351 = vmatpush1.msra.mxu0 0.0
        %1352 = vmatprep.subr.mxu0 0.0
        %1353 = vmatpush1.msra.mxu0 0.0
        %1354 = vmatprep.subr.mxu0 0.0
        %1355 = vmatpush1.msra.mxu0 0.0
        %1356 = vmatprep.subr.mxu0 0.0
        %1357 = vmatpush1.msra.mxu0 0.0
        %1358 = vmatprep.subr.mxu0 0.0
        %1359 = vmatpush1.msra.mxu0 0.0
        %1360 = vmatprep.subr.mxu0 0.0
        %1361 = vmatpush1.msra.mxu0 0.0
        %1362 = vmatprep.subr.mxu0 0.0
        %1363 = vmatpush1.msra.mxu0 0.0
        %1364 = vmatprep.subr.mxu0 0.0
        %1365 = vmatpush1.msra.mxu0 0.0
        %1366 = vmatprep.subr.mxu0 0.0
        %1367 = vmatpush1.msra.mxu0 0.0
        %1368 = vmatprep.subr.mxu0 0.0
        %1369 = vmatpush1.msra.mxu0 0.0
        %1370 = vmatprep.subr.mxu0 0.0
        %1371 = vmatpush1.msra.mxu0 0.0
        %1372 = vmatprep.subr.mxu0 0.0
        %1373 = vmatpush1.msra.mxu0 0.0
        %1374 = vmatprep.subr.mxu0 0.0
        %1375 = vmatpush1.msra.mxu0 0.0
        %1376 = vmatprep.subr.mxu0 0.0
        %1377 = vmatpush1.msra.mxu0 0.0
        %1378 = vmatprep.subr.mxu0 0.0
        %1379 = vmatpush1.msra.mxu0 0.0
        %1380 = vmatprep.subr.mxu0 0.0
        %1381 = vmatpush1.msra.mxu0 0.0
        %1382 = vmatprep.subr.mxu0 0.0
        %1383 = vmatpush1.msra.mxu0 0.0
        %1384 = vmatprep.mubr.f32.mxu0 0.0
        %1385 = vmatmul.mubr.f32.gmra.mrb[0].mxu0 %v870
        %v1386 = vpop.f32.mrb[0].mxu0
        %v1387 = vadd.f32 0.0, %v1386
        %v1388 = vpop.f32.mrb[0].mxu0
        %1389 = vdwg.mxu0
        %1390 = vmatprep.subr.mxu0 0.0
        %1391 = vmatpush1.msra.mxu0 %v498
        %1392 = vmatprep.subr.mxu0 0.0
        %1393 = vmatpush1.msra.mxu0 0.0
        %1394 = vmatprep.subr.mxu0 0.0
        %1395 = vmatpush1.msra.mxu0 0.0
        %1396 = vmatprep.subr.mxu0 0.0
        %1397 = vmatpush1.msra.mxu0 0.0
        %1398 = vmatprep.subr.mxu0 0.0
        %1399 = vmatpush1.msra.mxu0 0.0
        %1400 = vmatprep.subr.mxu0 0.0
        %1401 = vmatpush1.msra.mxu0 0.0
        %1402 = vmatprep.subr.mxu0 0.0
        %1403 = vmatpush1.msra.mxu0 0.0
        %1404 = vmatprep.subr.mxu0 0.0
        %1405 = vmatpush1.msra.mxu0 0.0
        %1406 = vmatprep.subr.mxu0 0.0
        %1407 = vmatpush1.msra.mxu0 0.0
        %1408 = vmatprep.subr.mxu0 0.0
        %1409 = vmatpush1.msra.mxu0 0.0
        %1410 = vmatprep.subr.mxu0 0.0
        %1411 = vmatpush1.msra.mxu0 0.0
        %1412 = vmatprep.subr.mxu0 0.0
        %1413 = vmatpush1.msra.mxu0 0.0
        %1414 = vmatprep.subr.mxu0 0.0
        %1415 = vmatpush1.msra.mxu0 0.0
        %1416 = vmatprep.subr.mxu0 0.0
        %1417 = vmatpush1.msra.mxu0 0.0
        %1418 = vmatprep.subr.mxu0 0.0
        %1419 = vmatpush1.msra.mxu0 0.0
        %1420 = vmatprep.subr.mxu0 0.0
        %1421 = vmatpush1.msra.mxu0 0.0
        %1422 = vmatprep.subr.mxu0 0.0
        %1423 = vmatpush1.msra.mxu0 0.0
        %1424 = vmatprep.subr.mxu0 0.0
        %1425 = vmatpush1.msra.mxu0 0.0
        %1426 = vmatprep.subr.mxu0 0.0
        %1427 = vmatpush1.msra.mxu0 0.0
        %1428 = vmatprep.subr.mxu0 0.0
        %1429 = vmatpush1.msra.mxu0 0.0
        %1430 = vmatprep.subr.mxu0 0.0
        %1431 = vmatpush1.msra.mxu0 0.0
        %1432 = vmatprep.subr.mxu0 0.0
        %1433 = vmatpush1.msra.mxu0 0.0
        %1434 = vmatprep.subr.mxu0 0.0
        %1435 = vmatpush1.msra.mxu0 0.0
        %1436 = vmatprep.subr.mxu0 0.0
        %1437 = vmatpush1.msra.mxu0 0.0
        %1438 = vmatprep.subr.mxu0 0.0
        %1439 = vmatpush1.msra.mxu0 0.0
        %1440 = vmatprep.subr.mxu0 0.0
        %1441 = vmatpush1.msra.mxu0 0.0
        %1442 = vmatprep.subr.mxu0 0.0
        %1443 = vmatpush1.msra.mxu0 0.0
        %1444 = vmatprep.subr.mxu0 0.0
        %1445 = vmatpush1.msra.mxu0 0.0
        %1446 = vmatprep.subr.mxu0 0.0
        %1447 = vmatpush1.msra.mxu0 0.0
        %1448 = vmatprep.subr.mxu0 0.0
        %1449 = vmatpush1.msra.mxu0 0.0
        %1450 = vmatprep.subr.mxu0 0.0
        %1451 = vmatpush1.msra.mxu0 0.0
        %1452 = vmatprep.subr.mxu0 0.0
        %1453 = vmatpush1.msra.mxu0 0.0
        %1454 = vmatprep.mubr.f32.mxu0 0.0
        %1455 = vmatmul.mubr.f32.gmra.mrb[0].mxu0 %v945
        %v1456 = vpop.f32.mrb[0].mxu0
        %v1457 = vadd.f32 0.0, %v1456
        %v1458 = vpop.f32.mrb[0].mxu0
        %1459 = vdwg.mxu0
        %1460 = vmatprep.subr.mxu0 0.0
        %1461 = vmatpush1.msra.mxu0 %v573
        %1462 = vmatprep.subr.mxu0 0.0
        %1463 = vmatpush1.msra.mxu0 0.0
        %1464 = vmatprep.subr.mxu0 0.0
        %1465 = vmatpush1.msra.mxu0 0.0
        %1466 = vmatprep.subr.mxu0 0.0
        %1467 = vmatpush1.msra.mxu0 0.0
        %1468 = vmatprep.subr.mxu0 0.0
        %1469 = vmatpush1.msra.mxu0 0.0
        %1470 = vmatprep.subr.mxu0 0.0
        %1471 = vmatpush1.msra.mxu0 0.0
        %1472 = vmatprep.subr.mxu0 0.0
        %1473 = vmatpush1.msra.mxu0 0.0
        %1474 = vmatprep.subr.mxu0 0.0
        %1475 = vmatpush1.msra.mxu0 0.0
        %1476 = vmatprep.subr.mxu0 0.0
        %1477 = vmatpush1.msra.mxu0 0.0
        %1478 = vmatprep.subr.mxu0 0.0
        %1479 = vmatpush1.msra.mxu0 0.0
        %1480 = vmatprep.subr.mxu0 0.0
        %1481 = vmatpush1.msra.mxu0 0.0
        %1482 = vmatprep.subr.mxu0 0.0
        %1483 = vmatpush1.msra.mxu0 0.0
        %1484 = vmatprep.subr.mxu0 0.0
        %1485 = vmatpush1.msra.mxu0 0.0
        %1486 = vmatprep.subr.mxu0 0.0
        %1487 = vmatpush1.msra.mxu0 0.0
        %1488 = vmatprep.subr.mxu0 0.0
        %1489 = vmatpush1.msra.mxu0 0.0
        %1490 = vmatprep.subr.mxu0 0.0
        %1491 = vmatpush1.msra.mxu0 0.0
        %1492 = vmatprep.subr.mxu0 0.0
        %1493 = vmatpush1.msra.mxu0 0.0
        %1494 = vmatprep.subr.mxu0 0.0
        %1495 = vmatpush1.msra.mxu0 0.0
        %1496 = vmatprep.subr.mxu0 0.0
        %1497 = vmatpush1.msra.mxu0 0.0
        %1498 = vmatprep.subr.mxu0 0.0
        %1499 = vmatpush1.msra.mxu0 0.0
        %1500 = vmatprep.subr.mxu0 0.0
        %1501 = vmatpush1.msra.mxu0 0.0
        %1502 = vmatprep.subr.mxu0 0.0
        %1503 = vmatpush1.msra.mxu0 0.0
        %1504 = vmatprep.subr.mxu0 0.0
        %1505 = vmatpush1.msra.mxu0 0.0
        %1506 = vmatprep.subr.mxu0 0.0
        %1507 = vmatpush1.msra.mxu0 0.0
        %1508 = vmatprep.subr.mxu0 0.0
        %1509 = vmatpush1.msra.mxu0 0.0
        %1510 = vmatprep.subr.mxu0 0.0
        %1511 = vmatpush1.msra.mxu0 0.0
        %1512 = vmatprep.subr.mxu0 0.0
        %1513 = vmatpush1.msra.mxu0 0.0
        %1514 = vmatprep.subr.mxu0 0.0
        %1515 = vmatpush1.msra.mxu0 0.0
        %1516 = vmatprep.subr.mxu0 0.0
        %1517 = vmatpush1.msra.mxu0 0.0
        %1518 = vmatprep.subr.mxu0 0.0
        %1519 = vmatpush1.msra.mxu0 0.0
        %1520 = vmatprep.subr.mxu0 0.0
        %1521 = vmatpush1.msra.mxu0 0.0
        %1522 = vmatprep.subr.mxu0 0.0
        %1523 = vmatpush1.msra.mxu0 0.0
        %1524 = vmatprep.mubr.f32.mxu0 0.0
        %1525 = vmatmul.mubr.f32.gmra.mrb[0].mxu0 %v1020
        %v1526 = vpop.f32.mrb[0].mxu0
        %v1527 = vadd.f32 0.0, %v1526
        %v1528 = vpop.f32.mrb[0].mxu0
        %1529 = vdwg.mxu0
        %1530 = vmatprep.subr.mxu0 0.0
        %1531 = vmatpush1.msra.mxu0 %v648
        %1532 = vmatprep.subr.mxu0 0.0
        %1533 = vmatpush1.msra.mxu0 0.0
        %1534 = vmatprep.subr.mxu0 0.0
        %1535 = vmatpush1.msra.mxu0 0.0
        %1536 = vmatprep.subr.mxu0 0.0
        %1537 = vmatpush1.msra.mxu0 0.0
        %1538 = vmatprep.subr.mxu0 0.0
        %1539 = vmatpush1.msra.mxu0 0.0
        %1540 = vmatprep.subr.mxu0 0.0
        %1541 = vmatpush1.msra.mxu0 0.0
        %1542 = vmatprep.subr.mxu0 0.0
        %1543 = vmatpush1.msra.mxu0 0.0
        %1544 = vmatprep.subr.mxu0 0.0
        %1545 = vmatpush1.msra.mxu0 0.0
        %1546 = vmatprep.subr.mxu0 0.0
        %1547 = vmatpush1.msra.mxu0 0.0
        %1548 = vmatprep.subr.mxu0 0.0
        %1549 = vmatpush1.msra.mxu0 0.0
        %1550 = vmatprep.subr.mxu0 0.0
        %1551 = vmatpush1.msra.mxu0 0.0
        %1552 = vmatprep.subr.mxu0 0.0
        %1553 = vmatpush1.msra.mxu0 0.0
        %1554 = vmatprep.subr.mxu0 0.0
        %1555 = vmatpush1.msra.mxu0 0.0
        %1556 = vmatprep.subr.mxu0 0.0
        %1557 = vmatpush1.msra.mxu0 0.0
        %1558 = vmatprep.subr.mxu0 0.0
        %1559 = vmatpush1.msra.mxu0 0.0
        %1560 = vmatprep.subr.mxu0 0.0
        %1561 = vmatpush1.msra.mxu0 0.0
        %1562 = vmatprep.subr.mxu0 0.0
        %1563 = vmatpush1.msra.mxu0 0.0
        %1564 = vmatprep.subr.mxu0 0.0
        %1565 = vmatpush1.msra.mxu0 0.0
        %1566 = vmatprep.subr.mxu0 0.0
        %1567 = vmatpush1.msra.mxu0 0.0
        %1568 = vmatprep.subr.mxu0 0.0
        %1569 = vmatpush1.msra.mxu0 0.0
        %1570 = vmatprep.subr.mxu0 0.0
        %1571 = vmatpush1.msra.mxu0 0.0
        %1572 = vmatprep.subr.mxu0 0.0
        %1573 = vmatpush1.msra.mxu0 0.0
        %1574 = vmatprep.subr.mxu0 0.0
        %1575 = vmatpush1.msra.mxu0 0.0
        %1576 = vmatprep.subr.mxu0 0.0
        %1577 = vmatpush1.msra.mxu0 0.0
        %1578 = vmatprep.subr.mxu0 0.0
        %1579 = vmatpush1.msra.mxu0 0.0
        %1580 = vmatprep.subr.mxu0 0.0
        %1581 = vmatpush1.msra.mxu0 0.0
        %1582 = vmatprep.subr.mxu0 0.0
        %1583 = vmatpush1.msra.mxu0 0.0
        %1584 = vmatprep.subr.mxu0 0.0
        %1585 = vmatpush1.msra.mxu0 0.0
        %1586 = vmatprep.subr.mxu0 0.0
        %1587 = vmatpush1.msra.mxu0 0.0
        %1588 = vmatprep.subr.mxu0 0.0
        %1589 = vmatpush1.msra.mxu0 0.0
        %1590 = vmatprep.subr.mxu0 0.0
        %1591 = vmatpush1.msra.mxu0 0.0
        %1592 = vmatprep.subr.mxu0 0.0
        %1593 = vmatpush1.msra.mxu0 0.0
        %1594 = vmatprep.mubr.f32.mxu0 0.0
        %1595 = vmatmul.mubr.f32.gmra.mrb[0].mxu0 %v1095
        %v1596 = vpop.f32.mrb[0].mxu0
        %v1597 = vadd.f32 0.0, %v1596
        %v1598 = vpop.f32.mrb[0].mxu0
        %1599 = vdwg.mxu0
        %1600 = vmatprep.subr.mxu0 0.0
        %1601 = vmatpush1.msra.mxu0 %v723
        %1602 = vmatprep.subr.mxu0 0.0
        %1603 = vmatpush1.msra.mxu0 0.0
        %1604 = vmatprep.subr.mxu0 0.0
        %1605 = vmatpush1.msra.mxu0 0.0
        %1606 = vmatprep.subr.mxu0 0.0
        %1607 = vmatpush1.msra.mxu0 0.0
        %1608 = vmatprep.subr.mxu0 0.0
        %1609 = vmatpush1.msra.mxu0 0.0
        %1610 = vmatprep.subr.mxu0 0.0
        %1611 = vmatpush1.msra.mxu0 0.0
        %1612 = vmatprep.subr.mxu0 0.0
        %1613 = vmatpush1.msra.mxu0 0.0
        %1614 = vmatprep.subr.mxu0 0.0
        %1615 = vmatpush1.msra.mxu0 0.0
        %1616 = vmatprep.subr.mxu0 0.0
        %1617 = vmatpush1.msra.mxu0 0.0
        %1618 = vmatprep.subr.mxu0 0.0
        %1619 = vmatpush1.msra.mxu0 0.0
        %1620 = vmatprep.subr.mxu0 0.0
        %1621 = vmatpush1.msra.mxu0 0.0
        %1622 = vmatprep.subr.mxu0 0.0
        %1623 = vmatpush1.msra.mxu0 0.0
        %1624 = vmatprep.subr.mxu0 0.0
        %1625 = vmatpush1.msra.mxu0 0.0
        %1626 = vmatprep.subr.mxu0 0.0
        %1627 = vmatpush1.msra.mxu0 0.0
        %1628 = vmatprep.subr.mxu0 0.0
        %1629 = vmatpush1.msra.mxu0 0.0
        %1630 = vmatprep.subr.mxu0 0.0
        %1631 = vmatpush1.msra.mxu0 0.0
        %1632 = vmatprep.subr.mxu0 0.0
        %1633 = vmatpush1.msra.mxu0 0.0
        %1634 = vmatprep.subr.mxu0 0.0
        %1635 = vmatpush1.msra.mxu0 0.0
        %1636 = vmatprep.subr.mxu0 0.0
        %1637 = vmatpush1.msra.mxu0 0.0
        %1638 = vmatprep.subr.mxu0 0.0
        %1639 = vmatpush1.msra.mxu0 0.0
        %1640 = vmatprep.subr.mxu0 0.0
        %1641 = vmatpush1.msra.mxu0 0.0
        %1642 = vmatprep.subr.mxu0 0.0
        %1643 = vmatpush1.msra.mxu0 0.0
        %1644 = vmatprep.subr.mxu0 0.0
        %1645 = vmatpush1.msra.mxu0 0.0
        %1646 = vmatprep.subr.mxu0 0.0
        %1647 = vmatpush1.msra.mxu0 0.0
        %1648 = vmatprep.subr.mxu0 0.0
        %1649 = vmatpush1.msra.mxu0 0.0
        %1650 = vmatprep.subr.mxu0 0.0
        %1651 = vmatpush1.msra.mxu0 0.0
        %1652 = vmatprep.subr.mxu0 0.0
        %1653 = vmatpush1.msra.mxu0 0.0
        %1654 = vmatprep.subr.mxu0 0.0
        %1655 = vmatpush1.msra.mxu0 0.0
        %1656 = vmatprep.subr.mxu0 0.0
        %1657 = vmatpush1.msra.mxu0 0.0
        %1658 = vmatprep.subr.mxu0 0.0
        %1659 = vmatpush1.msra.mxu0 0.0
        %1660 = vmatprep.subr.mxu0 0.0
        %1661 = vmatpush1.msra.mxu0 0.0
        %1662 = vmatprep.subr.mxu0 0.0
        %1663 = vmatpush1.msra.mxu0 0.0
        %1664 = vmatprep.mubr.f32.mxu0 0.0
        %1665 = vmatmul.mubr.f32.gmra.mrb[0].mxu0 %v1170
        %v1666 = vpop.f32.mrb[0].mxu0
        %v1667 = vadd.f32 0.0, %v1666
        %v1668 = vpop.f32.mrb[0].mxu0
        %1669 = vdwg.mxu0
        %1670 = vmatprep.subr.mxu0 0.0
        %1671 = vmatpush1.msra.mxu0 %v798
        %1672 = vmatprep.subr.mxu0 0.0
        %1673 = vmatpush1.msra.mxu0 0.0
        %1674 = vmatprep.subr.mxu0 0.0
        %1675 = vmatpush1.msra.mxu0 0.0
        %1676 = vmatprep.subr.mxu0 0.0
        %1677 = vmatpush1.msra.mxu0 0.0
        %1678 = vmatprep.subr.mxu0 0.0
        %1679 = vmatpush1.msra.mxu0 0.0
        %1680 = vmatprep.subr.mxu0 0.0
        %1681 = vmatpush1.msra.mxu0 0.0
        %1682 = vmatprep.subr.mxu0 0.0
        %1683 = vmatpush1.msra.mxu0 0.0
        %1684 = vmatprep.subr.mxu0 0.0
        %1685 = vmatpush1.msra.mxu0 0.0
        %1686 = vmatprep.subr.mxu0 0.0
        %1687 = vmatpush1.msra.mxu0 0.0
        %1688 = vmatprep.subr.mxu0 0.0
        %1689 = vmatpush1.msra.mxu0 0.0
        %1690 = vmatprep.subr.mxu0 0.0
        %1691 = vmatpush1.msra.mxu0 0.0
        %1692 = vmatprep.subr.mxu0 0.0
        %1693 = vmatpush1.msra.mxu0 0.0
        %1694 = vmatprep.subr.mxu0 0.0
        %1695 = vmatpush1.msra.mxu0 0.0
        %1696 = vmatprep.subr.mxu0 0.0
        %1697 = vmatpush1.msra.mxu0 0.0
        %1698 = vmatprep.subr.mxu0 0.0
        %1699 = vmatpush1.msra.mxu0 0.0
        %1700 = vmatprep.subr.mxu0 0.0
        %1701 = vmatpush1.msra.mxu0 0.0
        %1702 = vmatprep.subr.mxu0 0.0
        %1703 = vmatpush1.msra.mxu0 0.0
        %1704 = vmatprep.subr.mxu0 0.0
        %1705 = vmatpush1.msra.mxu0 0.0
        %1706 = vmatprep.subr.mxu0 0.0
        %1707 = vmatpush1.msra.mxu0 0.0
        %1708 = vmatprep.subr.mxu0 0.0
        %1709 = vmatpush1.msra.mxu0 0.0
        %1710 = vmatprep.subr.mxu0 0.0
        %1711 = vmatpush1.msra.mxu0 0.0
        %1712 = vmatprep.subr.mxu0 0.0
        %1713 = vmatpush1.msra.mxu0 0.0
        %1714 = vmatprep.subr.mxu0 0.0
        %1715 = vmatpush1.msra.mxu0 0.0
        %1716 = vmatprep.subr.mxu0 0.0
        %1717 = vmatpush1.msra.mxu0 0.0
        %1718 = vmatprep.subr.mxu0 0.0
        %1719 = vmatpush1.msra.mxu0 0.0
        %1720 = vmatprep.subr.mxu0 0.0
        %1721 = vmatpush1.msra.mxu0 0.0
        %1722 = vmatprep.subr.mxu0 0.0
        %1723 = vmatpush1.msra.mxu0 0.0
        %1724 = vmatprep.subr.mxu0 0.0
        %1725 = vmatpush1.msra.mxu0 0.0
        %1726 = vmatprep.subr.mxu0 0.0
        %1727 = vmatpush1.msra.mxu0 0.0
        %1728 = vmatprep.subr.mxu0 0.0
        %1729 = vmatpush1.msra.mxu0 0.0
        %1730 = vmatprep.subr.mxu0 0.0
        %1731 = vmatpush1.msra.mxu0 0.0
        %1732 = vmatprep.subr.mxu0 0.0
        %1733 = vmatpush1.msra.mxu0 0.0
        %1734 = vmatprep.mubr.f32.mxu0 0.0
        %1735 = vmatmul.mubr.f32.gmra.mrb[0].mxu0 %v1245
        %v1736 = vpop.f32.mrb[0].mxu0
        %v1737 = vadd.f32 0.0, %v1736
        %v1738 = vpop.f32.mrb[0].mxu0
        %1739 = vdwg.mxu0
        %v1740 = vsub.f32 %v492, %v942
        %v1741 = vsub.f32 %v567, %v1017
        %v1742 = vsub.f32 %v642, %v1092
        %v1743 = vsub.f32 %v717, %v1167
        %v1744 = vsub.f32 %v792, %v1242
        %v1745 = vsub.f32 %v867, %v1317
        %1746 = vmatprep.subr.mxu0 0.0
        %1747 = vmatpush1.msra.mxu0 %v873
        %1748 = vmatprep.subr.mxu0 0.0
        %1749 = vmatpush1.msra.mxu0 0.0
        %1750 = vmatprep.subr.mxu0 0.0
        %1751 = vmatpush1.msra.mxu0 0.0
        %1752 = vmatprep.subr.mxu0 0.0
        %1753 = vmatpush1.msra.mxu0 0.0
        %1754 = vmatprep.subr.mxu0 0.0
        %1755 = vmatpush1.msra.mxu0 0.0
        %1756 = vmatprep.subr.mxu0 0.0
        %1757 = vmatpush1.msra.mxu0 0.0
        %1758 = vmatprep.subr.mxu0 0.0
        %1759 = vmatpush1.msra.mxu0 0.0
        %1760 = vmatprep.subr.mxu0 0.0
        %1761 = vmatpush1.msra.mxu0 0.0
        %1762 = vmatprep.subr.mxu0 0.0
        %1763 = vmatpush1.msra.mxu0 0.0
        %1764 = vmatprep.subr.mxu0 0.0
        %1765 = vmatpush1.msra.mxu0 0.0
        %1766 = vmatprep.subr.mxu0 0.0
        %1767 = vmatpush1.msra.mxu0 0.0
        %1768 = vmatprep.subr.mxu0 0.0
        %1769 = vmatpush1.msra.mxu0 0.0
        %1770 = vmatprep.subr.mxu0 0.0
        %1771 = vmatpush1.msra.mxu0 0.0
        %1772 = vmatprep.subr.mxu0 0.0
        %1773 = vmatpush1.msra.mxu0 0.0
        %1774 = vmatprep.subr.mxu0 0.0
        %1775 = vmatpush1.msra.mxu0 0.0
        %1776 = vmatprep.subr.mxu0 0.0
        %1777 = vmatpush1.msra.mxu0 0.0
        %1778 = vmatprep.subr.mxu0 0.0
        %1779 = vmatpush1.msra.mxu0 0.0
        %1780 = vmatprep.subr.mxu0 0.0
        %1781 = vmatpush1.msra.mxu0 0.0
        %1782 = vmatprep.subr.mxu0 0.0
        %1783 = vmatpush1.msra.mxu0 0.0
        %1784 = vmatprep.subr.mxu0 0.0
        %1785 = vmatpush1.msra.mxu0 0.0
        %1786 = vmatprep.subr.mxu0 0.0
        %1787 = vmatpush1.msra.mxu0 0.0
        %1788 = vmatprep.subr.mxu0 0.0
        %1789 = vmatpush1.msra.mxu0 0.0
        %1790 = vmatprep.subr.mxu0 0.0
        %1791 = vmatpush1.msra.mxu0 0.0
        %1792 = vmatprep.subr.mxu0 0.0
        %1793 = vmatpush1.msra.mxu0 0.0
        %1794 = vmatprep.subr.mxu0 0.0
        %1795 = vmatpush1.msra.mxu0 0.0
        %1796 = vmatprep.subr.mxu0 0.0
        %1797 = vmatpush1.msra.mxu0 0.0
        %1798 = vmatprep.subr.mxu0 0.0
        %1799 = vmatpush1.msra.mxu0 0.0
        %1800 = vmatprep.subr.mxu0 0.0
        %1801 = vmatpush1.msra.mxu0 0.0
        %1802 = vmatprep.subr.mxu0 0.0
        %1803 = vmatpush1.msra.mxu0 0.0
        %1804 = vmatprep.subr.mxu0 0.0
        %1805 = vmatpush1.msra.mxu0 0.0
        %1806 = vmatprep.subr.mxu0 0.0
        %1807 = vmatpush1.msra.mxu0 0.0
        %1808 = vmatprep.subr.mxu0 0.0
        %1809 = vmatpush1.msra.mxu0 0.0
        %1810 = vmatprep.mubr.f32.mxu0 0.0
        %1811 = vmatmul.mubr.f32.gmra.mrb[0].mxu0 %v419
        %v1812 = vpop.f32.mrb[0].mxu0
        %v1813 = vadd.f32 %v1387, %v1812
        %v1814 = vpop.f32.mrb[0].mxu0
        %1815 = vdwg.mxu0
        %1816 = vmatprep.subr.mxu0 0.0
        %1817 = vmatpush1.msra.mxu0 %v948
        %1818 = vmatprep.subr.mxu0 0.0
        %1819 = vmatpush1.msra.mxu0 0.0
        %1820 = vmatprep.subr.mxu0 0.0
        %1821 = vmatpush1.msra.mxu0 0.0
        %1822 = vmatprep.subr.mxu0 0.0
        %1823 = vmatpush1.msra.mxu0 0.0
        %1824 = vmatprep.subr.mxu0 0.0
        %1825 = vmatpush1.msra.mxu0 0.0
        %1826 = vmatprep.subr.mxu0 0.0
        %1827 = vmatpush1.msra.mxu0 0.0
        %1828 = vmatprep.subr.mxu0 0.0
        %1829 = vmatpush1.msra.mxu0 0.0
        %1830 = vmatprep.subr.mxu0 0.0
        %1831 = vmatpush1.msra.mxu0 0.0
        %1832 = vmatprep.subr.mxu0 0.0
        %1833 = vmatpush1.msra.mxu0 0.0
        %1834 = vmatprep.subr.mxu0 0.0
        %1835 = vmatpush1.msra.mxu0 0.0
        %1836 = vmatprep.subr.mxu0 0.0
        %1837 = vmatpush1.msra.mxu0 0.0
        %1838 = vmatprep.subr.mxu0 0.0
        %1839 = vmatpush1.msra.mxu0 0.0
        %1840 = vmatprep.subr.mxu0 0.0
        %1841 = vmatpush1.msra.mxu0 0.0
        %1842 = vmatprep.subr.mxu0 0.0
        %1843 = vmatpush1.msra.mxu0 0.0
        %1844 = vmatprep.subr.mxu0 0.0
        %1845 = vmatpush1.msra.mxu0 0.0
        %1846 = vmatprep.subr.mxu0 0.0
        %1847 = vmatpush1.msra.mxu0 0.0
        %1848 = vmatprep.subr.mxu0 0.0
        %1849 = vmatpush1.msra.mxu0 0.0
        %1850 = vmatprep.subr.mxu0 0.0
        %1851 = vmatpush1.msra.mxu0 0.0
        %1852 = vmatprep.subr.mxu0 0.0
        %1853 = vmatpush1.msra.mxu0 0.0
        %1854 = vmatprep.subr.mxu0 0.0
        %1855 = vmatpush1.msra.mxu0 0.0
        %1856 = vmatprep.subr.mxu0 0.0
        %1857 = vmatpush1.msra.mxu0 0.0
        %1858 = vmatprep.subr.mxu0 0.0
        %1859 = vmatpush1.msra.mxu0 0.0
        %1860 = vmatprep.subr.mxu0 0.0
        %1861 = vmatpush1.msra.mxu0 0.0
        %1862 = vmatprep.subr.mxu0 0.0
        %1863 = vmatpush1.msra.mxu0 0.0
        %1864 = vmatprep.subr.mxu0 0.0
        %1865 = vmatpush1.msra.mxu0 0.0
        %1866 = vmatprep.subr.mxu0 0.0
        %1867 = vmatpush1.msra.mxu0 0.0
        %1868 = vmatprep.subr.mxu0 0.0
        %1869 = vmatpush1.msra.mxu0 0.0
        %1870 = vmatprep.subr.mxu0 0.0
        %1871 = vmatpush1.msra.mxu0 0.0
        %1872 = vmatprep.subr.mxu0 0.0
        %1873 = vmatpush1.msra.mxu0 0.0
        %1874 = vmatprep.subr.mxu0 0.0
        %1875 = vmatpush1.msra.mxu0 0.0
        %1876 = vmatprep.subr.mxu0 0.0
        %1877 = vmatpush1.msra.mxu0 0.0
        %1878 = vmatprep.subr.mxu0 0.0
        %1879 = vmatpush1.msra.mxu0 0.0
        %1880 = vmatprep.mubr.f32.mxu0 0.0
        %1881 = vmatmul.mubr.f32.gmra.mrb[0].mxu0 %v495
        %v1882 = vpop.f32.mrb[0].mxu0
        %v1883 = vadd.f32 %v1457, %v1882
        %v1884 = vpop.f32.mrb[0].mxu0
        %1885 = vdwg.mxu0
        %1886 = vmatprep.subr.mxu0 0.0
        %1887 = vmatpush1.msra.mxu0 %v1023
        %1888 = vmatprep.subr.mxu0 0.0
        %1889 = vmatpush1.msra.mxu0 0.0
        %1890 = vmatprep.subr.mxu0 0.0
        %1891 = vmatpush1.msra.mxu0 0.0
        %1892 = vmatprep.subr.mxu0 0.0
        %1893 = vmatpush1.msra.mxu0 0.0
        %1894 = vmatprep.subr.mxu0 0.0
        %1895 = vmatpush1.msra.mxu0 0.0
        %1896 = vmatprep.subr.mxu0 0.0
        %1897 = vmatpush1.msra.mxu0 0.0
        %1898 = vmatprep.subr.mxu0 0.0
        %1899 = vmatpush1.msra.mxu0 0.0
        %1900 = vmatprep.subr.mxu0 0.0
        %1901 = vmatpush1.msra.mxu0 0.0
        %1902 = vmatprep.subr.mxu0 0.0
        %1903 = vmatpush1.msra.mxu0 0.0
        %1904 = vmatprep.subr.mxu0 0.0
        %1905 = vmatpush1.msra.mxu0 0.0
        %1906 = vmatprep.subr.mxu0 0.0
        %1907 = vmatpush1.msra.mxu0 0.0
        %1908 = vmatprep.subr.mxu0 0.0
        %1909 = vmatpush1.msra.mxu0 0.0
        %1910 = vmatprep.subr.mxu0 0.0
        %1911 = vmatpush1.msra.mxu0 0.0
        %1912 = vmatprep.subr.mxu0 0.0
        %1913 = vmatpush1.msra.mxu0 0.0
        %1914 = vmatprep.subr.mxu0 0.0
        %1915 = vmatpush1.msra.mxu0 0.0
        %1916 = vmatprep.subr.mxu0 0.0
        %1917 = vmatpush1.msra.mxu0 0.0
        %1918 = vmatprep.subr.mxu0 0.0
        %1919 = vmatpush1.msra.mxu0 0.0
        %1920 = vmatprep.subr.mxu0 0.0
        %1921 = vmatpush1.msra.mxu0 0.0
        %1922 = vmatprep.subr.mxu0 0.0
        %1923 = vmatpush1.msra.mxu0 0.0
        %1924 = vmatprep.subr.mxu0 0.0
        %1925 = vmatpush1.msra.mxu0 0.0
        %1926 = vmatprep.subr.mxu0 0.0
        %1927 = vmatpush1.msra.mxu0 0.0
        %1928 = vmatprep.subr.mxu0 0.0
        %1929 = vmatpush1.msra.mxu0 0.0
        %1930 = vmatprep.subr.mxu0 0.0
        %1931 = vmatpush1.msra.mxu0 0.0
        %1932 = vmatprep.subr.mxu0 0.0
        %1933 = vmatpush1.msra.mxu0 0.0
        %1934 = vmatprep.subr.mxu0 0.0
        %1935 = vmatpush1.msra.mxu0 0.0
        %1936 = vmatprep.subr.mxu0 0.0
        %1937 = vmatpush1.msra.mxu0 0.0
        %1938 = vmatprep.subr.mxu0 0.0
        %1939 = vmatpush1.msra.mxu0 0.0
        %1940 = vmatprep.subr.mxu0 0.0
        %1941 = vmatpush1.msra.mxu0 0.0
        %1942 = vmatprep.subr.mxu0 0.0
        %1943 = vmatpush1.msra.mxu0 0.0
        %1944 = vmatprep.subr.mxu0 0.0
        %1945 = vmatpush1.msra.mxu0 0.0
        %1946 = vmatprep.subr.mxu0 0.0
        %1947 = vmatpush1.msra.mxu0 0.0
        %1948 = vmatprep.subr.mxu0 0.0
        %1949 = vmatpush1.msra.mxu0 0.0
        %1950 = vmatprep.mubr.f32.mxu0 0.0
        %1951 = vmatmul.mubr.f32.gmra.mrb[0].mxu0 %v570
        %v1952 = vpop.f32.mrb[0].mxu0
        %v1953 = vadd.f32 %v1527, %v1952
        %v1954 = vpop.f32.mrb[0].mxu0
        %1955 = vdwg.mxu0
        %1956 = vmatprep.subr.mxu0 0.0
        %1957 = vmatpush1.msra.mxu0 %v1098
        %1958 = vmatprep.subr.mxu0 0.0
        %1959 = vmatpush1.msra.mxu0 0.0
        %1960 = vmatprep.subr.mxu0 0.0
        %1961 = vmatpush1.msra.mxu0 0.0
        %1962 = vmatprep.subr.mxu0 0.0
        %1963 = vmatpush1.msra.mxu0 0.0
        %1964 = vmatprep.subr.mxu0 0.0
        %1965 = vmatpush1.msra.mxu0 0.0
        %1966 = vmatprep.subr.mxu0 0.0
        %1967 = vmatpush1.msra.mxu0 0.0
        %1968 = vmatprep.subr.mxu0 0.0
        %1969 = vmatpush1.msra.mxu0 0.0
        %1970 = vmatprep.subr.mxu0 0.0
        %1971 = vmatpush1.msra.mxu0 0.0
        %1972 = vmatprep.subr.mxu0 0.0
        %1973 = vmatpush1.msra.mxu0 0.0
        %1974 = vmatprep.subr.mxu0 0.0
        %1975 = vmatpush1.msra.mxu0 0.0
        %1976 = vmatprep.subr.mxu0 0.0
        %1977 = vmatpush1.msra.mxu0 0.0
        %1978 = vmatprep.subr.mxu0 0.0
        %1979 = vmatpush1.msra.mxu0 0.0
        %1980 = vmatprep.subr.mxu0 0.0
        %1981 = vmatpush1.msra.mxu0 0.0
        %1982 = vmatprep.subr.mxu0 0.0
        %1983 = vmatpush1.msra.mxu0 0.0
        %1984 = vmatprep.subr.mxu0 0.0
        %1985 = vmatpush1.msra.mxu0 0.0
        %1986 = vmatprep.subr.mxu0 0.0
        %1987 = vmatpush1.msra.mxu0 0.0
        %1988 = vmatprep.subr.mxu0 0.0
        %1989 = vmatpush1.msra.mxu0 0.0
        %1990 = vmatprep.subr.mxu0 0.0
        %1991 = vmatpush1.msra.mxu0 0.0
        %1992 = vmatprep.subr.mxu0 0.0
        %1993 = vmatpush1.msra.mxu0 0.0
        %1994 = vmatprep.subr.mxu0 0.0
        %1995 = vmatpush1.msra.mxu0 0.0
        %1996 = vmatprep.subr.mxu0 0.0
        %1997 = vmatpush1.msra.mxu0 0.0
        %1998 = vmatprep.subr.mxu0 0.0
        %1999 = vmatpush1.msra.mxu0 0.0
        %2000 = vmatprep.subr.mxu0 0.0
        %2001 = vmatpush1.msra.mxu0 0.0
        %2002 = vmatprep.subr.mxu0 0.0
        %2003 = vmatpush1.msra.mxu0 0.0
        %2004 = vmatprep.subr.mxu0 0.0
        %2005 = vmatpush1.msra.mxu0 0.0
        %2006 = vmatprep.subr.mxu0 0.0
        %2007 = vmatpush1.msra.mxu0 0.0
        %2008 = vmatprep.subr.mxu0 0.0
        %2009 = vmatpush1.msra.mxu0 0.0
        %2010 = vmatprep.subr.mxu0 0.0
        %2011 = vmatpush1.msra.mxu0 0.0
        %2012 = vmatprep.subr.mxu0 0.0
        %2013 = vmatpush1.msra.mxu0 0.0
        %2014 = vmatprep.subr.mxu0 0.0
        %2015 = vmatpush1.msra.mxu0 0.0
        %2016 = vmatprep.subr.mxu0 0.0
        %2017 = vmatpush1.msra.mxu0 0.0
        %2018 = vmatprep.subr.mxu0 0.0
        %2019 = vmatpush1.msra.mxu0 0.0
        %2020 = vmatprep.mubr.f32.mxu0 0.0
        %2021 = vmatmul.mubr.f32.gmra.mrb[0].mxu0 %v645
        %v2022 = vpop.f32.mrb[0].mxu0
        %v2023 = vadd.f32 %v1597, %v2022
        %v2024 = vpop.f32.mrb[0].mxu0
        %2025 = vdwg.mxu0
        %2026 = vmatprep.subr.mxu0 0.0
        %2027 = vmatpush1.msra.mxu0 %v1173
        %2028 = vmatprep.subr.mxu0 0.0
        %2029 = vmatpush1.msra.mxu0 0.0
        %2030 = vmatprep.subr.mxu0 0.0
        %2031 = vmatpush1.msra.mxu0 0.0
        %2032 = vmatprep.subr.mxu0 0.0
        %2033 = vmatpush1.msra.mxu0 0.0
        %2034 = vmatprep.subr.mxu0 0.0
        %2035 = vmatpush1.msra.mxu0 0.0
        %2036 = vmatprep.subr.mxu0 0.0
        %2037 = vmatpush1.msra.mxu0 0.0
        %2038 = vmatprep.subr.mxu0 0.0
        %2039 = vmatpush1.msra.mxu0 0.0
        %2040 = vmatprep.subr.mxu0 0.0
        %2041 = vmatpush1.msra.mxu0 0.0
        %2042 = vmatprep.subr.mxu0 0.0
        %2043 = vmatpush1.msra.mxu0 0.0
        %2044 = vmatprep.subr.mxu0 0.0
        %2045 = vmatpush1.msra.mxu0 0.0
        %2046 = vmatprep.subr.mxu0 0.0
        %2047 = vmatpush1.msra.mxu0 0.0
        %2048 = vmatprep.subr.mxu0 0.0
        %2049 = vmatpush1.msra.mxu0 0.0
        %2050 = vmatprep.subr.mxu0 0.0
        %2051 = vmatpush1.msra.mxu0 0.0
        %2052 = vmatprep.subr.mxu0 0.0
        %2053 = vmatpush1.msra.mxu0 0.0
        %2054 = vmatprep.subr.mxu0 0.0
        %2055 = vmatpush1.msra.mxu0 0.0
        %2056 = vmatprep.subr.mxu0 0.0
        %2057 = vmatpush1.msra.mxu0 0.0
        %2058 = vmatprep.subr.mxu0 0.0
        %2059 = vmatpush1.msra.mxu0 0.0
        %2060 = vmatprep.subr.mxu0 0.0
        %2061 = vmatpush1.msra.mxu0 0.0
        %2062 = vmatprep.subr.mxu0 0.0
        %2063 = vmatpush1.msra.mxu0 0.0
        %2064 = vmatprep.subr.mxu0 0.0
        %2065 = vmatpush1.msra.mxu0 0.0
        %2066 = vmatprep.subr.mxu0 0.0
        %2067 = vmatpush1.msra.mxu0 0.0
        %2068 = vmatprep.subr.mxu0 0.0
        %2069 = vmatpush1.msra.mxu0 0.0
        %2070 = vmatprep.subr.mxu0 0.0
        %2071 = vmatpush1.msra.mxu0 0.0
        %2072 = vmatprep.subr.mxu0 0.0
        %2073 = vmatpush1.msra.mxu0 0.0
        %2074 = vmatprep.subr.mxu0 0.0
        %2075 = vmatpush1.msra.mxu0 0.0
        %2076 = vmatprep.subr.mxu0 0.0
        %2077 = vmatpush1.msra.mxu0 0.0
        %2078 = vmatprep.subr.mxu0 0.0
        %2079 = vmatpush1.msra.mxu0 0.0
        %2080 = vmatprep.subr.mxu0 0.0
        %2081 = vmatpush1.msra.mxu0 0.0
        %2082 = vmatprep.subr.mxu0 0.0
        %2083 = vmatpush1.msra.mxu0 0.0
        %2084 = vmatprep.subr.mxu0 0.0
        %2085 = vmatpush1.msra.mxu0 0.0
        %2086 = vmatprep.subr.mxu0 0.0
        %2087 = vmatpush1.msra.mxu0 0.0
        %2088 = vmatprep.subr.mxu0 0.0
        %2089 = vmatpush1.msra.mxu0 0.0
        %2090 = vmatprep.mubr.f32.mxu0 0.0
        %2091 = vmatmul.mubr.f32.gmra.mrb[0].mxu0 %v720
        %v2092 = vpop.f32.mrb[0].mxu0
        %v2093 = vadd.f32 %v1667, %v2092
        %v2094 = vpop.f32.mrb[0].mxu0
        %2095 = vdwg.mxu0
        %2096 = vmatprep.subr.mxu0 0.0
        %2097 = vmatpush1.msra.mxu0 %v1248
        %2098 = vmatprep.subr.mxu0 0.0
        %2099 = vmatpush1.msra.mxu0 0.0
        %2100 = vmatprep.subr.mxu0 0.0
        %2101 = vmatpush1.msra.mxu0 0.0
        %2102 = vmatprep.subr.mxu0 0.0
        %2103 = vmatpush1.msra.mxu0 0.0
        %2104 = vmatprep.subr.mxu0 0.0
        %2105 = vmatpush1.msra.mxu0 0.0
        %2106 = vmatprep.subr.mxu0 0.0
        %2107 = vmatpush1.msra.mxu0 0.0
        %2108 = vmatprep.subr.mxu0 0.0
        %2109 = vmatpush1.msra.mxu0 0.0
        %2110 = vmatprep.subr.mxu0 0.0
        %2111 = vmatpush1.msra.mxu0 0.0
        %2112 = vmatprep.subr.mxu0 0.0
        %2113 = vmatpush1.msra.mxu0 0.0
        %2114 = vmatprep.subr.mxu0 0.0
        %2115 = vmatpush1.msra.mxu0 0.0
        %2116 = vmatprep.subr.mxu0 0.0
        %2117 = vmatpush1.msra.mxu0 0.0
        %2118 = vmatprep.subr.mxu0 0.0
        %2119 = vmatpush1.msra.mxu0 0.0
        %2120 = vmatprep.subr.mxu0 0.0
        %2121 = vmatpush1.msra.mxu0 0.0
        %2122 = vmatprep.subr.mxu0 0.0
        %2123 = vmatpush1.msra.mxu0 0.0
        %2124 = vmatprep.subr.mxu0 0.0
        %2125 = vmatpush1.msra.mxu0 0.0
        %2126 = vmatprep.subr.mxu0 0.0
        %2127 = vmatpush1.msra.mxu0 0.0
        %2128 = vmatprep.subr.mxu0 0.0
        %2129 = vmatpush1.msra.mxu0 0.0
        %2130 = vmatprep.subr.mxu0 0.0
        %2131 = vmatpush1.msra.mxu0 0.0
        %2132 = vmatprep.subr.mxu0 0.0
        %2133 = vmatpush1.msra.mxu0 0.0
        %2134 = vmatprep.subr.mxu0 0.0
        %2135 = vmatpush1.msra.mxu0 0.0
        %2136 = vmatprep.subr.mxu0 0.0
        %2137 = vmatpush1.msra.mxu0 0.0
        %2138 = vmatprep.subr.mxu0 0.0
        %2139 = vmatpush1.msra.mxu0 0.0
        %2140 = vmatprep.subr.mxu0 0.0
        %2141 = vmatpush1.msra.mxu0 0.0
        %2142 = vmatprep.subr.mxu0 0.0
        %2143 = vmatpush1.msra.mxu0 0.0
        %2144 = vmatprep.subr.mxu0 0.0
        %2145 = vmatpush1.msra.mxu0 0.0
        %2146 = vmatprep.subr.mxu0 0.0
        %2147 = vmatpush1.msra.mxu0 0.0
        %2148 = vmatprep.subr.mxu0 0.0
        %2149 = vmatpush1.msra.mxu0 0.0
        %2150 = vmatprep.subr.mxu0 0.0
        %2151 = vmatpush1.msra.mxu0 0.0
        %2152 = vmatprep.subr.mxu0 0.0
        %2153 = vmatpush1.msra.mxu0 0.0
        %2154 = vmatprep.subr.mxu0 0.0
        %2155 = vmatpush1.msra.mxu0 0.0
        %2156 = vmatprep.subr.mxu0 0.0
        %2157 = vmatpush1.msra.mxu0 0.0
        %2158 = vmatprep.subr.mxu0 0.0
        %2159 = vmatpush1.msra.mxu0 0.0
        %2160 = vmatprep.mubr.f32.mxu0 0.0
        %2161 = vmatmul.mubr.f32.gmra.mrb[0].mxu0 %v795
        %v2162 = vpop.f32.mrb[0].mxu0
        %v2163 = vadd.f32 %v1737, %v2162
        %v2164 = vpop.f32.mrb[0].mxu0
        %2165 = vdwg.mxu0
        %v2172 = vrot.slane %v1741, 7
        %vm2173 = vcmask 1041409
        %v2174 = vsel %vm2173, %v2172, %v1740
        %v2175 = vrot.slane %v1742, 6
        %vm2176 = vcmask 1042434
        %v2177 = vsel %vm2176, %v2175, %v2174
        %v2178 = vrot.slane %v1743, 5
        %vm2179 = vcmask 1043459
        %v2180 = vsel %vm2179, %v2178, %v2177
        %v2181 = vrot.slane %v1744, 4
        %vm2182 = vcmask 1044484
        %v2183 = vsel %vm2182, %v2181, %v2180
        %v2184 = vrot.slane %v1745, 3
        %vm2185 = vcmask 1045509
        %v2186 = vsel %vm2185, %v2184, %v2183
        %v2194 = vrot.slane %v1813, 2
        %v2195 = vrot.slane %v1883, 1
        %vm2196 = vcmask 1047559
        %v2197 = vsel %vm2196, %v2195, %v2194
        %v2198 = vrot.slane %v2023, 7
        %v2199 = vsel %vm2173, %v2198, %v1953
        %v2200 = vrot.slane %v2093, 6
        %v2201 = vsel %vm2176, %v2200, %v2199
        %v2202 = vrot.slane %v2163, 5
        %v2203 = vsel %vm2179, %v2202, %v2201
        %vm2206 = vcmask 1045504
        %v2207 = vsel %vm2206, %v2186, %v2197
        %2208 = vxpose.xlu0.b32.start [1/16] %v2207, 128
        %2209 = vxpose.xlu0.b32.cont [2/16] %v2203, 128
        %2210 = vxpose.xlu0.b32.cont [3/16] 0.0, 128
        %2211 = vxpose.xlu0.b32.cont [4/16] 0.0, 128
        %2212 = vxpose.xlu0.b32.cont [5/16] 0.0, 128
        %2213 = vxpose.xlu0.b32.cont [6/16] 0.0, 128
        %2214 = vxpose.xlu0.b32.cont [7/16] 0.0, 128
        %2215 = vxpose.xlu0.b32.cont [8/16] 0.0, 128
        %2216 = vxpose.xlu0.b32.cont [9/16] 0.0, 128
        %2217 = vxpose.xlu0.b32.cont [10/16] 0.0, 128
        %2218 = vxpose.xlu0.b32.cont [11/16] 0.0, 128
        %2219 = vxpose.xlu0.b32.cont [12/16] 0.0, 128
        %2220 = vxpose.xlu0.b32.cont [13/16] 0.0, 128
        %2221 = vxpose.xlu0.b32.cont [14/16] 0.0, 128
        %2222 = vxpose.xlu0.b32.cont [15/16] 0.0, 128
        %2223 = vxpose.xlu0.b32.end [16/16] 0.0, 128
        %v2224 = vpop.trf.xlu0
        %v2225 = vpop.trf.xlu0
        %v2226 = vpop.trf.xlu0
        %v2227 = vpop.trf.xlu0
        %v2228 = vpop.trf.xlu0
        %v2229 = vpop.trf.xlu0
        %v2230 = vpop.trf.xlu0
        %v2231 = vpop.trf.xlu0
        %v2232 = vpop.trf.xlu0
        %v2233 = vpop.trf.xlu0
        %v2234 = vpop.trf.xlu0
        %v2235 = vpop.trf.xlu0
        %v2236 = vpop.trf.xlu0
        %v2237 = vpop.trf.xlu0
        %v2238 = vpop.trf.xlu0
        %v2239 = vpop.trf.xlu0
        %vm2240 = vcmask 97280
        %v2242 = vsel %vm2240, %v2224, 0
        %v2245 = vsel %vm421, %v224, 0
        %2247 = vmatprep.subr.mxu0 0.0
        %2248 = vmatpush1.msra.mxu0 %v223
        %2249 = vmatprep.subr.mxu0 0.0
        %2250 = vmatpush1.msra.mxu0 %v2245
        %2251 = vmatprep.subr.mxu0 0.0
        %2252 = vmatpush1.msra.mxu0 0.0
        %2253 = vmatprep.subr.mxu0 0.0
        %2254 = vmatpush1.msra.mxu0 0.0
        %2255 = vmatprep.subr.mxu0 0.0
        %2256 = vmatpush1.msra.mxu0 0.0
        %2257 = vmatprep.subr.mxu0 0.0
        %2258 = vmatpush1.msra.mxu0 0.0
        %2259 = vmatprep.subr.mxu0 0.0
        %2260 = vmatpush1.msra.mxu0 0.0
        %2261 = vmatprep.subr.mxu0 0.0
        %2262 = vmatpush1.msra.mxu0 0.0
        %2263 = vmatprep.subr.mxu0 0.0
        %2264 = vmatpush1.msra.mxu0 0.0
        %2265 = vmatprep.subr.mxu0 0.0
        %2266 = vmatpush1.msra.mxu0 0.0
        %2267 = vmatprep.subr.mxu0 0.0
        %2268 = vmatpush1.msra.mxu0 0.0
        %2269 = vmatprep.subr.mxu0 0.0
        %2270 = vmatpush1.msra.mxu0 0.0
        %2271 = vmatprep.subr.mxu0 0.0
        %2272 = vmatpush1.msra.mxu0 0.0
        %2273 = vmatprep.subr.mxu0 0.0
        %2274 = vmatpush1.msra.mxu0 0.0
        %2275 = vmatprep.subr.mxu0 0.0
        %2276 = vmatpush1.msra.mxu0 0.0
        %2277 = vmatprep.subr.mxu0 0.0
        %2278 = vmatpush1.msra.mxu0 0.0
        %2279 = vmatprep.subr.mxu0 0.0
        %2280 = vmatpush1.msra.mxu0 0.0
        %2281 = vmatprep.subr.mxu0 0.0
        %2282 = vmatpush1.msra.mxu0 0.0
        %2283 = vmatprep.subr.mxu0 0.0
        %2284 = vmatpush1.msra.mxu0 0.0
        %2285 = vmatprep.subr.mxu0 0.0
        %2286 = vmatpush1.msra.mxu0 0.0
        %2287 = vmatprep.subr.mxu0 0.0
        %2288 = vmatpush1.msra.mxu0 0.0
        %2289 = vmatprep.subr.mxu0 0.0
        %2290 = vmatpush1.msra.mxu0 0.0
        %2291 = vmatprep.subr.mxu0 0.0
        %2292 = vmatpush1.msra.mxu0 0.0
        %2293 = vmatprep.subr.mxu0 0.0
        %2294 = vmatpush1.msra.mxu0 0.0
        %2295 = vmatprep.subr.mxu0 0.0
        %2296 = vmatpush1.msra.mxu0 0.0
        %2297 = vmatprep.subr.mxu0 0.0
        %2298 = vmatpush1.msra.mxu0 0.0
        %2299 = vmatprep.subr.mxu0 0.0
        %2300 = vmatpush1.msra.mxu0 0.0
        %2301 = vmatprep.subr.mxu0 0.0
        %2302 = vmatpush1.msra.mxu0 0.0
        %2303 = vmatprep.subr.mxu0 0.0
        %2304 = vmatpush1.msra.mxu0 0.0
        %2305 = vmatprep.subr.mxu0 0.0
        %2306 = vmatpush1.msra.mxu0 0.0
        %2307 = vmatprep.subr.mxu0 0.0
        %2308 = vmatpush1.msra.mxu0 0.0
        %2309 = vmatprep.subr.mxu0 0.0
        %2310 = vmatpush1.msra.mxu0 0.0
        %2311 = vmatprep.mubr.f32.mxu0 0.0
        %2312 = vmatmul.mubr.f32.gmra.mrb[0].mxu0 %v2242
        %v2313 = vpop.f32.mrb[0].mxu0
        %v2314 = vadd.f32 0.0, %v2313
        %v2315 = vpop.f32.mrb[0].mxu0
        %2316 = vdwg.mxu0
        %vm2317 = vcmask 125952
        %2318 = vst.msk [vmem:[%s215] sm:$0xf] %vm2317, %v2314
        %s2319 = sand.u32 %s137, 1
        %s2320 = scalar_lea.sflag [#allocation3], %s2319
        %s2321 = sand.u32 %s137, 1
        %s2322 = smul.addr %s2321, 4
        %s2323 = scalar_lea.vmem [#allocation2], %s2322
        // Predicated region
        $region41: #{tpu_custom_call.1} parent=39 // pred_check
          %p2324 = pneg %p147
        $region42: #{tpu_custom_call.1} parent=39 // pred_check_branch
          %2326 = sbr.rel (%p2324) target = $region44
        $region43: #{tpu_custom_call.1} parent=39 // pred_region
          %s2328 = ssub.s32 64, 64
          %2329 = vsyncadd %s2320, %s2328
          %s2330 = smul.addr %s19, 64
          %s2331 = scalar_lea.hbm %s5, %s2330
          %s2333 = sshll.u32 %s2323, 4
          %s2334 = int_to_ptr.vmem [resolvable:$true] %s2333
          %2336 = dma.vmem_to_hbm [thread:$0]  %s2334, 64, %s2331, %s2320
        $region44: #{tpu_custom_call.1} parent=39 // pred_fallthru
          _
      $region40: #{tpu_custom_call.1} parent=5 // pred_fallthru
        _
      %p2337 = scmp.le.s32.totalorder 2, %s14
      // Predicated region
      $region45: #{tpu_custom_call.1} parent=5 // pred_check
        %p2338 = pneg %p2337
      $region46: #{tpu_custom_call.1} parent=5 // pred_check_branch
        %2340 = sbr.rel (%p2338) target = $region48
      $region47: #{tpu_custom_call.1} parent=5 // pred_region
        %s2341 = ssub.s32 %s14, 2
        // Predicated region
        $region49: #{tpu_custom_call.1} parent=47 // pred_check
          %p2342 = pneg %p153
        $region50: #{tpu_custom_call.1} parent=47 // pred_check_branch
          %2344 = sbr.rel (%p2342) target = $region52
        $region51: #{tpu_custom_call.1} parent=47 // pred_region
          %s2345 = sand.u32 %s138, 1
          %s2346 = scalar_lea.sflag [#allocation3], %s2345
          %s2347 = sand.u32 %s138, 1
          %s2348 = smul.addr %s2347, 4
          %s2349 = scalar_lea.vmem [#allocation2], %s2348
          %2350 = dma.done %s2346, 64
        $region52: #{tpu_custom_call.1} parent=47 // pred_fallthru
          _
      $region48: #{tpu_custom_call.1} parent=5 // pred_fallthru
        _
    $region6: #{tpu_custom_call.1} parent=1 // loop_footer
      %s18 = sadd.s32 1, %s14
    $region7: #{tpu_custom_call.1} parent=1 // loop_footer_branch
      %13 = sbr.rel target = $region3
    $region8: #{tpu_custom_call.1} parent=1 // loop_exit
      _
    %2351 = vsyncpa [#allocation3], 1
    %s2352 = scalar_lea.sflag [#allocation3], 1
    %2353 = vsyncpa %s2352, 1

</llo_original>
